<compile_context>
chip_gen: v7x
topology: tpu7x:2x2x1
jax: 0.10.0
libtpu: 0.0.40
codegen_flags: <defaults>
</compile_context>

<pallas_src>
import jax
import jax.numpy as jnp
from jax.experimental import pallas as pl
from jax.experimental.pallas import tpu as pltpu


_T = 16  # the module hard-codes nn.Linear(16, 1) on the time axis


def _round_up(n, m):
    return ((n + m - 1) // m) * m


def _vmem_physical_bytes():
    """Physical VMEM per TensorCore; conservative 64 MiB (v7x) if unknown."""
    try:
        info = pltpu.get_tpu_info()
        v = getattr(info, "vmem_capacity_bytes", None)
        if v:
            return int(v)
    except Exception:
        pass
    return 64 * 1024 * 1024


def time_att_kernel(x_ref, w1t_ref, w2_ref, wt_ref, bt_ref, o_ref):
    TB, T, D = x_ref.shape
    x = x_ref[...]                                   # (TB, T, D), input dtype
    w1t = w1t_ref[...]                               # (D, D)  == linear1.weight.T
    w2 = w2_ref[...].astype(jnp.float32)             # (1, D)  == linear2.weight
    wt = wt_ref[...].astype(jnp.float32)             # (1, T)  == time.weight
    bt = bt_ref[0]                                   # scalar  == time.bias (SMEM)

    # linear1 + tanh as one dense (TB*T, D) MXU matmul, f32 accumulation.
    h = jnp.tanh(
        jnp.dot(x.reshape(TB * T, D), w1t, preferred_element_type=jnp.float32))

    # linear2 (out_features == 1): VPU multiply + lane reduce (keep it off the MXU).
    y = jnp.sum(h.reshape(TB, T, D) * w2, axis=-1)   # (TB, T) f32

    # Softmax over the time axis (PyTorch dim=1), lane-major (TB, T) layout.
    y = y - jnp.max(y, axis=-1, keepdims=True)
    e = jnp.exp(y)
    beta = e * pl.reciprocal(jnp.sum(e, axis=-1, keepdims=True), approx=True)

    # Fused (beta * x) + Linear(16, 1) over time:
    #   out[b, d] = sum_t (beta[b, t] * wt[t]) * x[b, t, d] + bt
    # Product stays in x's dtype (no f32 copy of the x slab); reduce accumulates f32.
    combined = (beta * wt).astype(x.dtype)           # (TB, T)
    out = jnp.sum(combined[:, :, None] * x, axis=1, dtype=jnp.float32) + bt
    o_ref[...] = out.astype(o_ref.dtype)


def time_att(x, w1, w2, wt, bt, *, tb=None, vmem_limit_bytes=None):
    """Pallas Time_att forward.

    x : (B, 16, D); w1 : (D, D) = linear1.weight; w2 : (1, D) = linear2.weight;
    wt : (1, 16) = time.weight; bt : (1,) = time.bias.  Returns (B, D) in x.dtype.
    """
    B, T, D = x.shape
    assert T == _T, "Time_att hard-codes nn.Linear(16, 1) on the time axis"

    out_dtype = x.dtype
    x_it = jnp.dtype(x.dtype).itemsize
    o_it = jnp.dtype(out_dtype).itemsize

    # Host-side weight prep (done once): keeps transposes out of the kernel.
    w1t = jnp.swapaxes(jnp.asarray(w1), 0, 1)             # (D, D): x @ w1t == x @ w1.T
    w2r = jnp.asarray(w2).reshape(1, D)                   # (1, D)
    wtr = jnp.asarray(wt).reshape(1, T)                   # (1, T)
    bt1 = jnp.asarray(bt).reshape(1).astype(jnp.float32)  # (1,) scalar -> SMEM
    w_it = jnp.dtype(w1t.dtype).itemsize

    # ---- VMEM-budget driven batch tile -------------------------------------
    # Per batch element: double-buffered x tile + double-buffered out tile +
    # ~3 live f32 (16, D) temporaries (h, score product, epilogue reduce).
    per_tb = 2 * T * D * x_it + 2 * D * o_it + 3 * T * D * 4
    fixed = 2 * D * D * w_it + (2 << 20)     # weights (worst case 2-buffered) + headroom
    phys = _vmem_physical_bytes()
    budget = (phys * 3) // 4                 # ~48 MiB on v7x, ~96 MiB on v5e/v6e

    sub = max(8, 32 // min(x_it, o_it))      # sublane granularity (8 f32 / 16 bf16)
    if tb is None:
        tb = (budget - fixed) // per_tb
        tb = min(max(int(tb), sub), 512)
    tb = max(sub, _round_up(int(tb), sub))

    b_ceil = _round_up(B, sub)
    tb = min(tb, b_ceil)
    # Keep >= 2 grid steps when the batch allows it (dual-TC sharding on v7x).
    if tb >= b_ceil and b_ceil >= 2 * sub:
        tb = _round_up(b_ceil // 2, sub)

    b_pad = _round_up(B, tb)
    grid = (b_pad // tb,)
    # NOTE: padded rows produce `time.bias` (softmax of zeros is uniform); they are
    # sliced off below -- do not reuse the padded output.
    xp = x if b_pad == B else jnp.pad(x, ((0, b_pad - B), (0, 0), (0, 0)))

    if vmem_limit_bytes is None:
        est = fixed + tb * per_tb + (4 << 20)
        vmem_limit_bytes = int(min(max(est, 32 << 20), phys - (4 << 20)))

    def _run(single_buffer_weights):
        wkw = {"pipeline_mode": pl.Buffered(1)} if single_buffer_weights else {}
        call = pl.pallas_call(
            time_att_kernel,
            out_shape=jax.ShapeDtypeStruct((b_pad, D), out_dtype),
            grid_spec=pltpu.PrefetchScalarGridSpec(
                num_scalar_prefetch=0,
                grid=grid,
                in_specs=[
                    pl.BlockSpec((tb, T, D), lambda b: (b, 0, 0)),       # x slab
                    pl.BlockSpec((D, D), lambda b: (0, 0), **wkw),       # linear1.weight.T
                    pl.BlockSpec((1, D), lambda b: (0, 0), **wkw),       # linear2.weight row
                    pl.BlockSpec((1, T), lambda b: (0, 0), **wkw),       # time.weight row
                    pl.BlockSpec(memory_space=pltpu.MemorySpace.SMEM),   # time.bias
                ],
                out_specs=pl.BlockSpec((tb, D), lambda b: (b, 0)),
            ),
            compiler_params=pltpu.CompilerParams(
                dimension_semantics=("parallel",),
                vmem_limit_bytes=vmem_limit_bytes,
            ),
        )
        return call(xp, w1t, w2r, wtr, bt1)

    try:
        out = jax.block_until_ready(_run(True))
    except Exception:
        # Fallback for JAX builds without BlockSpec(pipeline_mode=...): default
        # double-buffering of the grid-invariant weight blocks.
        out = _run(False)
    return out[:B]


def time_att_ref(x, w1, w2, wt, bt):
    # Pure-JAX reference mirroring the PyTorch forward (linear1/linear2 bias=False).
    h = jnp.tanh(jnp.einsum("btd,ed->bte", x, w1))
    y = jnp.einsum("btd,od->bto", h, w2)                          # (B, T, 1)
    beta = jax.nn.softmax(y, axis=1)
    c = beta * x                                                  # (B, T, D)
    out = jnp.einsum("bdt,ot->bdo", jnp.swapaxes(c, -1, -2), wt) + bt
    return jnp.squeeze(out, axis=-1)                              # (B, D)


if __name__ == "__main__":
    key = jax.random.PRNGKey(0)

    def run_case(B, D, dtype, atol, tb=None):
        kx, k1, k2, k3, k4 = jax.random.split(jax.random.fold_in(key, B * 131 + D), 5)
        xf = jax.random.normal(kx, (B, _T, D), dtype=jnp.float32)
        w1f = jax.random.normal(k1, (D, D), dtype=jnp.float32) * 0.1   # linear1.weight
        w2f = jax.random.normal(k2, (1, D), dtype=jnp.float32) * 0.1   # linear2.weight
        wtf = jax.random.normal(k3, (1, _T), dtype=jnp.float32) * 0.1  # time.weight
        btf = jax.random.normal(k4, (1,), dtype=jnp.float32) * 0.1     # time.bias

        x, w1, w2, wt = (a.astype(dtype) for a in (xf, w1f, w2f, wtf))
        out = jax.block_until_ready(time_att(x, w1, w2, wt, btf, tb=tb))
        ref = time_att_ref(xf, w1f, w2f, wtf, btf)
        assert out.shape == (B, D), out.shape
        err = float(jnp.max(jnp.abs(out.astype(jnp.float32) - ref)))
        assert err <= atol, f"max |err|={err} (B={B}, D={D}, dtype={dtype})"

    run_case(B=4, D=64, dtype=jnp.float32, atol=2e-3)            # small case, auto tb
    run_case(B=20, D=64, dtype=jnp.float32, atol=2e-3, tb=8)     # multi-step grid + batch padding
    run_case(B=48, D=128, dtype=jnp.float32, atol=2e-3)          # auto tb with >=2-step grid split
    run_case(B=8, D=128, dtype=jnp.bfloat16, atol=5e-2)          # bf16 I/O (HBM-bound recommendation)
    print("KERNEL_OK")
</pallas_src>

<mosaic_0001>
module attributes {stable_mosaic.version = 11 : i64} {
  func.func @time_att_kernel(%arg0: i32, %arg1: memref<8x16x64xf32, #tpu.memory_space<vmem>>, %arg2: memref<64x64xf32, #tpu.memory_space<vmem>>, %arg3: memref<1x64xf32, #tpu.memory_space<vmem>>, %arg4: memref<1x16xf32, #tpu.memory_space<vmem>>, %arg5: memref<1xf32, #tpu.memory_space<smem>>, %arg6: memref<8x64xf32, #tpu.memory_space<vmem>>) attributes {dimension_semantics = [#tpu.dimension_semantics<parallel>], iteration_bounds = array<i64: 1>, scalar_prefetch = 0 : i64, scratch_operands = 0 : i64, tpu.core_type = #tpu.core_type<tc>, window_params = [{transform_indices = @transform_0, window_bounds = array<i64: 8, 16, 64>}, {pipeline_mode = #tpu.pipeline_mode<synchronous>, transform_indices = @transform_1, window_bounds = array<i64: 64, 64>}, {pipeline_mode = #tpu.pipeline_mode<synchronous>, transform_indices = @transform_2, window_bounds = array<i64: 1, 64>}, {pipeline_mode = #tpu.pipeline_mode<synchronous>, transform_indices = @transform_3, window_bounds = array<i64: 1, 16>}, {transform_indices = @transform_4, window_bounds = array<i64: 1>}, {transform_indices = @transform_5, window_bounds = array<i64: 8, 64>}]} {
    %c0 = arith.constant 0 : index
    %c0_0 = arith.constant 0 : index
    %c0_1 = arith.constant 0 : index
    %0 = vector.load %arg1[%c0, %c0_0, %c0_1] : memref<8x16x64xf32, #tpu.memory_space<vmem>>, vector<8x16x64xf32>
    %c0_2 = arith.constant 0 : index
    %c0_3 = arith.constant 0 : index
    %1 = vector.load %arg2[%c0_2, %c0_3] : memref<64x64xf32, #tpu.memory_space<vmem>>, vector<64x64xf32>
    %c0_4 = arith.constant 0 : index
    %c0_5 = arith.constant 0 : index
    %2 = vector.load %arg3[%c0_4, %c0_5] : memref<1x64xf32, #tpu.memory_space<vmem>>, vector<1x64xf32>
    %c0_6 = arith.constant 0 : index
    %c0_7 = arith.constant 0 : index
    %3 = vector.load %arg4[%c0_6, %c0_7] : memref<1x16xf32, #tpu.memory_space<vmem>>, vector<1x16xf32>
    %c0_8 = arith.constant 0 : index
    %4 = memref.load %arg5[%c0_8] : memref<1xf32, #tpu.memory_space<smem>>
    %5 = vector.shape_cast %0 : vector<8x16x64xf32> to vector<128x64xf32>
    %cst = arith.constant dense<0.000000e+00> : vector<128x64xf32>
    %6 = tpu.matmul %5, %1, %cst {dimension_numbers = #tpu.dot_dimension_numbers<[1], [0], [0], [1], [0, 0, 1, 1], [], []>} : vector<128x64xf32>, vector<64x64xf32>, vector<128x64xf32> -> vector<128x64xf32>
    %7 = math.tanh %6 : vector<128x64xf32>
    %8 = vector.shape_cast %7 : vector<128x64xf32> to vector<8x16x64xf32>
    %9 = vector.shape_cast %2 : vector<1x64xf32> to vector<1x1x64xf32>
    %10 = vector.broadcast %9 : vector<1x1x64xf32> to vector<8x16x64xf32>
    %11 = arith.mulf %8, %10 : vector<8x16x64xf32>
    %cst_9 = arith.constant dense<0.000000e+00> : vector<8x16xf32>
    %12 = vector.multi_reduction <add>, %11, %cst_9 [2] : vector<8x16x64xf32> to vector<8x16xf32>
    %cst_10 = arith.constant dense<0xFF800000> : vector<8xf32>
    %13 = vector.multi_reduction <maximumf>, %12, %cst_10 [1] : vector<8x16xf32> to vector<8xf32>
    %14 = vector.shape_cast %13 : vector<8xf32> to vector<8x1xf32>
    %15 = vector.broadcast %14 : vector<8x1xf32> to vector<8x16xf32>
    %16 = arith.subf %12, %15 : vector<8x16xf32>
    %17 = math.exp %16 : vector<8x16xf32>
    %cst_11 = arith.constant dense<0.000000e+00> : vector<8xf32>
    %18 = vector.multi_reduction <add>, %17, %cst_11 [1] : vector<8x16xf32> to vector<8xf32>
    %19 = vector.shape_cast %18 : vector<8xf32> to vector<8x1xf32>
    %20 = tpu.reciprocal %19 {approx = true} : vector<8x1xf32> -> vector<8x1xf32>
    %21 = vector.broadcast %20 : vector<8x1xf32> to vector<8x16xf32>
    %22 = arith.mulf %17, %21 : vector<8x16xf32>
    %23 = vector.broadcast %3 : vector<1x16xf32> to vector<8x16xf32>
    %24 = arith.mulf %22, %23 : vector<8x16xf32>
    %25 = vector.shape_cast %24 : vector<8x16xf32> to vector<8x16x1xf32>
    %26 = vector.broadcast %25 : vector<8x16x1xf32> to vector<8x16x64xf32>
    %27 = arith.mulf %26, %0 : vector<8x16x64xf32>
    %cst_12 = arith.constant dense<0.000000e+00> : vector<8x64xf32>
    %28 = vector.multi_reduction <add>, %27, %cst_12 [1] : vector<8x16x64xf32> to vector<8x64xf32>
    %29 = vector.broadcast %4 : f32 to vector<8x64xf32>
    %30 = arith.addf %28, %29 : vector<8x64xf32>
    %c0_13 = arith.constant 0 : index
    %c0_14 = arith.constant 0 : index
    %31 = vector.load %arg6[%c0_13, %c0_14] : memref<8x64xf32, #tpu.memory_space<vmem>>, vector<8x64xf32>
    tpu.vector_store %arg6[%c0_13, %c0_14], %30 {strides = array<i32>} : memref<8x64xf32, #tpu.memory_space<vmem>>, vector<8x64xf32>,
    return
  }
  func.func @transform_0(%arg0: i32) -> (i32, i32, i32) {
    %c0_i32 = arith.constant 0 : i32
    %c0_i32_0 = arith.constant 0 : i32
    %c0_i32_1 = arith.constant 0 : i32
    return %arg0, %c0_i32, %c0_i32_0 : i32, i32, i32
  }
  func.func @transform_1(%arg0: i32) -> (i32, i32) {
    %c0_i32 = arith.constant 0 : i32
    %c0_i32_0 = arith.constant 0 : i32
    %c0_i32_1 = arith.constant 0 : i32
    return %c0_i32, %c0_i32_0 : i32, i32
  }
  func.func @transform_2(%arg0: i32) -> (i32, i32) {
    %c0_i32 = arith.constant 0 : i32
    %c0_i32_0 = arith.constant 0 : i32
    %c0_i32_1 = arith.constant 0 : i32
    return %c0_i32, %c0_i32_0 : i32, i32
  }
  func.func @transform_3(%arg0: i32) -> (i32, i32) {
    %c0_i32 = arith.constant 0 : i32
    %c0_i32_0 = arith.constant 0 : i32
    %c0_i32_1 = arith.constant 0 : i32
    return %c0_i32, %c0_i32_0 : i32, i32
  }
  func.func @transform_4(%arg0: i32) -> i32 {
    %c0_i32 = arith.constant 0 : i32
    %c0_i32_0 = arith.constant 0 : i32
    return %c0_i32 : i32
  }
  func.func @transform_5(%arg0: i32) -> (i32, i32) {
    %c0_i32 = arith.constant 0 : i32
    %c0_i32_0 = arith.constant 0 : i32
    return %arg0, %c0_i32 : i32, i32
  }
}

module attributes {stable_mosaic.version = 11 : i64} {
  func.func @time_att_kernel(%arg0: i32, %arg1: memref<8x16x64xf32, #tpu.memory_space<vmem>>, %arg2: memref<64x64xf32, #tpu.memory_space<vmem>>, %arg3: memref<1x64xf32, #tpu.memory_space<vmem>>, %arg4: memref<1x16xf32, #tpu.memory_space<vmem>>, %arg5: memref<1xf32, #tpu.memory_space<smem>>, %arg6: memref<8x64xf32, #tpu.memory_space<vmem>>) attributes {dimension_semantics = [#tpu.dimension_semantics<parallel>], iteration_bounds = array<i64: 1>, scalar_prefetch = 0 : i64, scratch_operands = 0 : i64, tpu.core_type = #tpu.core_type<tc>, window_params = [{transform_indices = @transform_0, window_bounds = array<i64: 8, 16, 64>}, {pipeline_mode = #tpu.pipeline_mode<synchronous>, transform_indices = @transform_1, window_bounds = array<i64: 64, 64>}, {pipeline_mode = #tpu.pipeline_mode<synchronous>, transform_indices = @transform_2, window_bounds = array<i64: 1, 64>}, {pipeline_mode = #tpu.pipeline_mode<synchronous>, transform_indices = @transform_3, window_bounds = array<i64: 1, 16>}, {transform_indices = @transform_4, window_bounds = array<i64: 1>}, {transform_indices = @transform_5, window_bounds = array<i64: 8, 64>}]} {
    %c0 = arith.constant 0 : index
    %c0_0 = arith.constant 0 : index
    %c0_1 = arith.constant 0 : index
    %0 = vector.load %arg1[%c0, %c0_0, %c0_1] : memref<8x16x64xf32, #tpu.memory_space<vmem>>, vector<8x16x64xf32>
    %c0_2 = arith.constant 0 : index
    %c0_3 = arith.constant 0 : index
    %1 = vector.load %arg2[%c0_2, %c0_3] : memref<64x64xf32, #tpu.memory_space<vmem>>, vector<64x64xf32>
    %c0_4 = arith.constant 0 : index
    %c0_5 = arith.constant 0 : index
    %2 = vector.load %arg3[%c0_4, %c0_5] : memref<1x64xf32, #tpu.memory_space<vmem>>, vector<1x64xf32>
    %c0_6 = arith.constant 0 : index
    %c0_7 = arith.constant 0 : index
    %3 = vector.load %arg4[%c0_6, %c0_7] : memref<1x16xf32, #tpu.memory_space<vmem>>, vector<1x16xf32>
    %c0_8 = arith.constant 0 : index
    %4 = memref.load %arg5[%c0_8] : memref<1xf32, #tpu.memory_space<smem>>
    %5 = vector.shape_cast %0 : vector<8x16x64xf32> to vector<128x64xf32>
    %cst = arith.constant dense<0.000000e+00> : vector<128x64xf32>
    %6 = tpu.matmul %5, %1, %cst {dimension_numbers = #tpu.dot_dimension_numbers<[1], [0], [0], [1], [0, 0, 1, 1], [], []>} : vector<128x64xf32>, vector<64x64xf32>, vector<128x64xf32> -> vector<128x64xf32>
    %7 = math.tanh %6 : vector<128x64xf32>
    %8 = vector.shape_cast %7 : vector<128x64xf32> to vector<8x16x64xf32>
    %9 = vector.shape_cast %2 : vector<1x64xf32> to vector<1x1x64xf32>
    %10 = vector.broadcast %9 : vector<1x1x64xf32> to vector<8x16x64xf32>
    %11 = arith.mulf %8, %10 : vector<8x16x64xf32>
    %cst_9 = arith.constant dense<0.000000e+00> : vector<8x16xf32>
    %12 = vector.multi_reduction <add>, %11, %cst_9 [2] : vector<8x16x64xf32> to vector<8x16xf32>
    %cst_10 = arith.constant dense<0xFF800000> : vector<8xf32>
    %13 = vector.multi_reduction <maximumf>, %12, %cst_10 [1] : vector<8x16xf32> to vector<8xf32>
    %14 = vector.shape_cast %13 : vector<8xf32> to vector<8x1xf32>
    %15 = vector.broadcast %14 : vector<8x1xf32> to vector<8x16xf32>
    %16 = arith.subf %12, %15 : vector<8x16xf32>
    %17 = math.exp %16 : vector<8x16xf32>
    %cst_11 = arith.constant dense<0.000000e+00> : vector<8xf32>
    %18 = vector.multi_reduction <add>, %17, %cst_11 [1] : vector<8x16xf32> to vector<8xf32>
    %19 = vector.shape_cast %18 : vector<8xf32> to vector<8x1xf32>
    %20 = tpu.reciprocal %19 {approx = true} : vector<8x1xf32> -> vector<8x1xf32>
    %21 = vector.broadcast %20 : vector<8x1xf32> to vector<8x16xf32>
    %22 = arith.mulf %17, %21 : vector<8x16xf32>
    %23 = vector.broadcast %3 : vector<1x16xf32> to vector<8x16xf32>
    %24 = arith.mulf %22, %23 : vector<8x16xf32>
    %25 = vector.shape_cast %24 : vector<8x16xf32> to vector<8x16x1xf32>
    %26 = vector.broadcast %25 : vector<8x16x1xf32> to vector<8x16x64xf32>
    %27 = arith.mulf %26, %0 : vector<8x16x64xf32>
    %cst_12 = arith.constant dense<0.000000e+00> : vector<8x64xf32>
    %28 = vector.multi_reduction <add>, %27, %cst_12 [1] : vector<8x16x64xf32> to vector<8x64xf32>
    %29 = vector.broadcast %4 : f32 to vector<8x64xf32>
    %30 = arith.addf %28, %29 : vector<8x64xf32>
    %c0_13 = arith.constant 0 : index
    %c0_14 = arith.constant 0 : index
    %31 = vector.load %arg6[%c0_13, %c0_14] : memref<8x64xf32, #tpu.memory_space<vmem>>, vector<8x64xf32>
    tpu.vector_store %arg6[%c0_13, %c0_14], %30 {strides = array<i32>} : memref<8x64xf32, #tpu.memory_space<vmem>>, vector<8x64xf32>,
    return
  }
  func.func @transform_0(%arg0: i32) -> (i32, i32, i32) {
    %c0_i32 = arith.constant 0 : i32
    %c0_i32_0 = arith.constant 0 : i32
    %c0_i32_1 = arith.constant 0 : i32
    return %arg0, %c0_i32, %c0_i32_0 : i32, i32, i32
  }
  func.func @transform_1(%arg0: i32) -> (i32, i32) {
    %c0_i32 = arith.constant 0 : i32
    %c0_i32_0 = arith.constant 0 : i32
    %c0_i32_1 = arith.constant 0 : i32
    return %c0_i32, %c0_i32_0 : i32, i32
  }
  func.func @transform_2(%arg0: i32) -> (i32, i32) {
    %c0_i32 = arith.constant 0 : i32
    %c0_i32_0 = arith.constant 0 : i32
    %c0_i32_1 = arith.constant 0 : i32
    return %c0_i32, %c0_i32_0 : i32, i32
  }
  func.func @transform_3(%arg0: i32) -> (i32, i32) {
    %c0_i32 = arith.constant 0 : i32
    %c0_i32_0 = arith.constant 0 : i32
    %c0_i32_1 = arith.constant 0 : i32
    return %c0_i32, %c0_i32_0 : i32, i32
  }
  func.func @transform_4(%arg0: i32) -> i32 {
    %c0_i32 = arith.constant 0 : i32
    %c0_i32_0 = arith.constant 0 : i32
    return %c0_i32 : i32
  }
  func.func @transform_5(%arg0: i32) -> (i32, i32) {
    %c0_i32 = arith.constant 0 : i32
    %c0_i32_0 = arith.constant 0 : i32
    return %arg0, %c0_i32 : i32, i32
  }
}

</mosaic_0001>

<llo_original>
// kernel: tpu_custom_call.1
$region0: #{tpu_custom_call.1}
  #allocation0 [shape = 'u32[]', space=smem, size = 0x4, offset = 0x4, fixed_abs, tag = 'smem constant byte address 0x4 - core index']
  #allocation1 [shape = 'u32[144,128]{1,0:T(1,128)}', space=vmem, size = 0x12000, scoped, tag = 'internal scratch']
  #allocation2 [shape = 'f32[1]{0:T(128)S(6)}', space=smem, size = 0x200, scoped, tag = 'scoped memory for tpu_custom_call.1']
  %s0 = inlined_call_operand.hbm [shape: f32[8,16,64], index: 0, kind: input, shape index: {}]
  %s1 = inlined_call_operand.hbm [shape: f32[64,64], index: 1, kind: input, shape index: {}]
  %s2 = inlined_call_operand.vmem [shape: f32[1,64], index: 2, kind: input, shape index: {}]
  %s3 = inlined_call_operand.vmem [shape: f32[1,16], index: 3, kind: input, shape index: {}]
  %s4 = inlined_call_operand.<no memory space> [shape: f32[1], index: 4, kind: input, shape index: {}]
  %s5 = inlined_call_operand.hbm [shape: f32[8,64], index: 5, kind: output, shape index: {}]
  %s6 = sld [smem:[#allocation0]]
  $region38: #{tpu_custom_call.1} parent=0
    _
  %s8 = ssub.s32 1, %s6
  %s9 = scalar_select 0, %s8, %s6
  %10 = sst [smem:[#allocation2]] %s4
  $region1: #{tpu_custom_call.1} parent=0
    #allocation3 [shape = 'u8[65536]{0}', space=vmem, size = 0x10000, scoped, tag = 'input window, operand 0, single buffered']
    #allocation4 [shape = 's32[1]{0}', space=sflag, size = 0x4, scoped, tag = 'scoped memory for tpu_custom_call.1']
    #allocation5 [shape = 's32[1]{0}', space=sflag, size = 0x4, scoped, tag = 'scoped memory for tpu_custom_call.1']
    #allocation6 [shape = 'u8[32768]{0}', space=vmem, size = 0x8000, scoped, tag = 'input window, operand 1, single buffered']
    #allocation7 [shape = 's32[1]{0}', space=sflag, size = 0x4, scoped, tag = 'scoped memory for tpu_custom_call.1']
    #allocation8 [shape = 'u8[4096]{0}', space=vmem, size = 0x1000, scoped, tag = 'output window, operand 0, single buffered']
    %11 = vsyncpa [#allocation4], 0
    %12 = vsyncpa [#allocation7], 0
    %13 = vsyncpa [#allocation5], 0
    // Predicated region
    $region2: #{tpu_custom_call.1} parent=1 // pred_check
      _
    $region3: #{tpu_custom_call.1} parent=1 // pred_check_branch
      %15 = sbr.rel (0) target = $region5
    $region4: #{tpu_custom_call.1} parent=1 // pred_region
      %s17 = ssub.s32 2048, 2048
      %18 = vsyncadd [#allocation4], %s17
      %s19 = sshll.u32 [#allocation3], 4
      %s20 = int_to_ptr.vmem [resolvable:$true] %s19
      %25 = dma.hbm_to_vmem [thread:$0]  %s0, 2048, %s20, [#allocation4], 128, 128, 8
    $region5: #{tpu_custom_call.1} parent=1 // pred_fallthru
      _
    // Predicated region
    $region6: #{tpu_custom_call.1} parent=1 // pred_check
      _
    $region7: #{tpu_custom_call.1} parent=1 // pred_check_branch
      %27 = sbr.rel (0) target = $region9
    $region8: #{tpu_custom_call.1} parent=1 // pred_region
      %s29 = ssub.s32 1024, 1024
      %30 = vsyncadd [#allocation7], %s29
      %s31 = sshll.u32 [#allocation6], 4
      %s32 = int_to_ptr.vmem [resolvable:$true] %s31
      %37 = dma.hbm_to_vmem [thread:$0]  %s1, 1024, %s32, [#allocation7], 128, 128, 8
    $region9: #{tpu_custom_call.1} parent=1 // pred_fallthru
      _
    // Predicated region
    $region10: #{tpu_custom_call.1} parent=1 // pred_check
      _
    $region11: #{tpu_custom_call.1} parent=1 // pred_check_branch
      %39 = sbr.rel (0) target = $region13
    $region12: #{tpu_custom_call.1} parent=1 // pred_region
      _
    $region13: #{tpu_custom_call.1} parent=1 // pred_fallthru
      _
    // Predicated region
    $region14: #{tpu_custom_call.1} parent=1 // pred_check
      _
    $region15: #{tpu_custom_call.1} parent=1 // pred_check_branch
      %41 = sbr.rel (0) target = $region17
    $region16: #{tpu_custom_call.1} parent=1 // pred_region
      _
    $region17: #{tpu_custom_call.1} parent=1 // pred_fallthru
      _
    // Predicated region
    $region18: #{tpu_custom_call.1} parent=1 // pred_check
      _
    $region19: #{tpu_custom_call.1} parent=1 // pred_check_branch
      %43 = sbr.rel (0) target = $region21
    $region20: #{tpu_custom_call.1} parent=1 // pred_region
      _
    $region21: #{tpu_custom_call.1} parent=1 // pred_fallthru
      _
    // Predicated region
    $region22: #{tpu_custom_call.1} parent=1 // pred_check
      _
    $region23: #{tpu_custom_call.1} parent=1 // pred_check_branch
      %45 = sbr.rel (0) target = $region25
    $region24: #{tpu_custom_call.1} parent=1 // pred_region
      %46 = dma.done [#allocation4], 2048
    $region25: #{tpu_custom_call.1} parent=1 // pred_fallthru
      _
    // Predicated region
    $region26: #{tpu_custom_call.1} parent=1 // pred_check
      _
    $region27: #{tpu_custom_call.1} parent=1 // pred_check_branch
      %48 = sbr.rel (0) target = $region29
    $region28: #{tpu_custom_call.1} parent=1 // pred_region
      %49 = dma.done [#allocation7], 1024
    $region29: #{tpu_custom_call.1} parent=1 // pred_fallthru
      _
    %v50 = vld [vmem:[#allocation3] sm:$0xff]
    %v51 = vld [vmem:[#allocation3 + $0x8] sm:$0xff]
    %v52 = vld [vmem:[#allocation3 + $0x10] sm:$0xff]
    %v53 = vld [vmem:[#allocation3 + $0x18] sm:$0xff]
    %v54 = vld [vmem:[#allocation3 + $0x20] sm:$0xff]
    %v55 = vld [vmem:[#allocation3 + $0x28] sm:$0xff]
    %v56 = vld [vmem:[#allocation3 + $0x30] sm:$0xff]
    %v57 = vld [vmem:[#allocation3 + $0x38] sm:$0xff]
    %v58 = vld [vmem:[#allocation3 + $0x40] sm:$0xff]
    %v59 = vld [vmem:[#allocation3 + $0x48] sm:$0xff]
    %v60 = vld [vmem:[#allocation3 + $0x50] sm:$0xff]
    %v61 = vld [vmem:[#allocation3 + $0x58] sm:$0xff]
    %v62 = vld [vmem:[#allocation3 + $0x60] sm:$0xff]
    %v63 = vld [vmem:[#allocation3 + $0x68] sm:$0xff]
    %v64 = vld [vmem:[#allocation3 + $0x70] sm:$0xff]
    %v65 = vld [vmem:[#allocation3 + $0x78] sm:$0xff]
    %v66 = vld [vmem:[#allocation6] sm:$0xff]
    %v67 = vld [vmem:[#allocation6 + $0x8] sm:$0xff]
    %v68 = vld [vmem:[#allocation6 + $0x10] sm:$0xff]
    %v69 = vld [vmem:[#allocation6 + $0x18] sm:$0xff]
    %v70 = vld [vmem:[#allocation6 + $0x20] sm:$0xff]
    %v71 = vld [vmem:[#allocation6 + $0x28] sm:$0xff]
    %v72 = vld [vmem:[#allocation6 + $0x30] sm:$0xff]
    %v73 = vld [vmem:[#allocation6 + $0x38] sm:$0xff]
    %v74 = vld [vmem:[%s2] sm:$0x1]
    %v75 = vld [vmem:[%s3] sm:$0x1]
    %s76 = sld [smem:[#allocation2]]
    %vm77 = vcmask 523264
    %v79 = vsel %vm77, %v50, 0
    %v82 = vsel %vm77, %v51, 0
    %v85 = vsel %vm77, %v52, 0
    %v88 = vsel %vm77, %v53, 0
    %v91 = vsel %vm77, %v54, 0
    %v94 = vsel %vm77, %v55, 0
    %v97 = vsel %vm77, %v56, 0
    %v100 = vsel %vm77, %v57, 0
    %v103 = vsel %vm77, %v58, 0
    %v106 = vsel %vm77, %v59, 0
    %v109 = vsel %vm77, %v60, 0
    %v112 = vsel %vm77, %v61, 0
    %v115 = vsel %vm77, %v62, 0
    %v118 = vsel %vm77, %v63, 0
    %v121 = vsel %vm77, %v64, 0
    %v124 = vsel %vm77, %v65, 0
    %126 = vmatprep.subr.mxu0 0.0
    %127 = vmatpush1.msra.mxu0 %v66
    %128 = vmatprep.subr.mxu0 0.0
    %129 = vmatpush1.msra.mxu0 %v67
    %130 = vmatprep.subr.mxu0 0.0
    %131 = vmatpush1.msra.mxu0 %v68
    %132 = vmatprep.subr.mxu0 0.0
    %133 = vmatpush1.msra.mxu0 %v69
    %134 = vmatprep.subr.mxu0 0.0
    %135 = vmatpush1.msra.mxu0 %v70
    %136 = vmatprep.subr.mxu0 0.0
    %137 = vmatpush1.msra.mxu0 %v71
    %138 = vmatprep.subr.mxu0 0.0
    %139 = vmatpush1.msra.mxu0 %v72
    %140 = vmatprep.subr.mxu0 0.0
    %141 = vmatpush1.msra.mxu0 %v73
    %142 = vmatprep.subr.mxu0 0.0
    %143 = vmatpush1.msra.mxu0 0.0
    %144 = vmatprep.subr.mxu0 0.0
    %145 = vmatpush1.msra.mxu0 0.0
    %146 = vmatprep.subr.mxu0 0.0
    %147 = vmatpush1.msra.mxu0 0.0
    %148 = vmatprep.subr.mxu0 0.0
    %149 = vmatpush1.msra.mxu0 0.0
    %150 = vmatprep.subr.mxu0 0.0
    %151 = vmatpush1.msra.mxu0 0.0
    %152 = vmatprep.subr.mxu0 0.0
    %153 = vmatpush1.msra.mxu0 0.0
    %154 = vmatprep.subr.mxu0 0.0
    %155 = vmatpush1.msra.mxu0 0.0
    %156 = vmatprep.subr.mxu0 0.0
    %157 = vmatpush1.msra.mxu0 0.0
    %158 = vmatprep.subr.mxu0 0.0
    %159 = vmatpush1.msra.mxu0 0.0
    %160 = vmatprep.subr.mxu0 0.0
    %161 = vmatpush1.msra.mxu0 0.0
    %162 = vmatprep.subr.mxu0 0.0
    %163 = vmatpush1.msra.mxu0 0.0
    %164 = vmatprep.subr.mxu0 0.0
    %165 = vmatpush1.msra.mxu0 0.0
    %166 = vmatprep.subr.mxu0 0.0
    %167 = vmatpush1.msra.mxu0 0.0
    %168 = vmatprep.subr.mxu0 0.0
    %169 = vmatpush1.msra.mxu0 0.0
    %170 = vmatprep.subr.mxu0 0.0
    %171 = vmatpush1.msra.mxu0 0.0
    %172 = vmatprep.subr.mxu0 0.0
    %173 = vmatpush1.msra.mxu0 0.0
    %174 = vmatprep.subr.mxu0 0.0
    %175 = vmatpush1.msra.mxu0 0.0
    %176 = vmatprep.subr.mxu0 0.0
    %177 = vmatpush1.msra.mxu0 0.0
    %178 = vmatprep.subr.mxu0 0.0
    %179 = vmatpush1.msra.mxu0 0.0
    %180 = vmatprep.subr.mxu0 0.0
    %181 = vmatpush1.msra.mxu0 0.0
    %182 = vmatprep.subr.mxu0 0.0
    %183 = vmatpush1.msra.mxu0 0.0
    %184 = vmatprep.subr.mxu0 0.0
    %185 = vmatpush1.msra.mxu0 0.0
    %186 = vmatprep.subr.mxu0 0.0
    %187 = vmatpush1.msra.mxu0 0.0
    %188 = vmatprep.subr.mxu0 0.0
    %189 = vmatpush1.msra.mxu0 0.0
    %190 = vmatprep.mubr.f32.mxu0 0.0
    %191 = vmatmul.mubr.f32.gmra.mrb[0].mxu0 %v79
    %v192 = vpop.f32.mrb[0].mxu0
    %v193 = vadd.f32 0.0, %v192
    %v194 = vpop.f32.mrb[0].mxu0
    %195 = vmatprep.mubr.f32.mxu0 0.0
    %196 = vmatmul.mubr.f32.gmra.mrb[0].mxu0 %v82
    %v197 = vpop.f32.mrb[0].mxu0
    %v198 = vadd.f32 0.0, %v197
    %v199 = vpop.f32.mrb[0].mxu0
    %200 = vmatprep.mubr.f32.mxu0 0.0
    %201 = vmatmul.mubr.f32.gmra.mrb[0].mxu0 %v85
    %v202 = vpop.f32.mrb[0].mxu0
    %v203 = vadd.f32 0.0, %v202
    %v204 = vpop.f32.mrb[0].mxu0
    %205 = vmatprep.mubr.f32.mxu0 0.0
    %206 = vmatmul.mubr.f32.gmra.mrb[0].mxu0 %v88
    %v207 = vpop.f32.mrb[0].mxu0
    %v208 = vadd.f32 0.0, %v207
    %v209 = vpop.f32.mrb[0].mxu0
    %210 = vmatprep.mubr.f32.mxu0 0.0
    %211 = vmatmul.mubr.f32.gmra.mrb[0].mxu0 %v91
    %v212 = vpop.f32.mrb[0].mxu0
    %v213 = vadd.f32 0.0, %v212
    %v214 = vpop.f32.mrb[0].mxu0
    %215 = vmatprep.mubr.f32.mxu0 0.0
    %216 = vmatmul.mubr.f32.gmra.mrb[0].mxu0 %v94
    %v217 = vpop.f32.mrb[0].mxu0
    %v218 = vadd.f32 0.0, %v217
    %v219 = vpop.f32.mrb[0].mxu0
    %220 = vmatprep.mubr.f32.mxu0 0.0
    %221 = vmatmul.mubr.f32.gmra.mrb[0].mxu0 %v97
    %v222 = vpop.f32.mrb[0].mxu0
    %v223 = vadd.f32 0.0, %v222
    %v224 = vpop.f32.mrb[0].mxu0
    %225 = vmatprep.mubr.f32.mxu0 0.0
    %226 = vmatmul.mubr.f32.gmra.mrb[0].mxu0 %v100
    %v227 = vpop.f32.mrb[0].mxu0
    %v228 = vadd.f32 0.0, %v227
    %v229 = vpop.f32.mrb[0].mxu0
    %230 = vmatprep.mubr.f32.mxu0 0.0
    %231 = vmatmul.mubr.f32.gmra.mrb[0].mxu0 %v103
    %v232 = vpop.f32.mrb[0].mxu0
    %v233 = vadd.f32 0.0, %v232
    %v234 = vpop.f32.mrb[0].mxu0
    %235 = vmatprep.mubr.f32.mxu0 0.0
    %236 = vmatmul.mubr.f32.gmra.mrb[0].mxu0 %v106
    %v237 = vpop.f32.mrb[0].mxu0
    %v238 = vadd.f32 0.0, %v237
    %v239 = vpop.f32.mrb[0].mxu0
    %240 = vmatprep.mubr.f32.mxu0 0.0
    %241 = vmatmul.mubr.f32.gmra.mrb[0].mxu0 %v109
    %v242 = vpop.f32.mrb[0].mxu0
    %v243 = vadd.f32 0.0, %v242
    %v244 = vpop.f32.mrb[0].mxu0
    %245 = vmatprep.mubr.f32.mxu0 0.0
    %246 = vmatmul.mubr.f32.gmra.mrb[0].mxu0 %v112
    %v247 = vpop.f32.mrb[0].mxu0
    %v248 = vadd.f32 0.0, %v247
    %v249 = vpop.f32.mrb[0].mxu0
    %250 = vmatprep.mubr.f32.mxu0 0.0
    %251 = vmatmul.mubr.f32.gmra.mrb[0].mxu0 %v115
    %v252 = vpop.f32.mrb[0].mxu0
    %v253 = vadd.f32 0.0, %v252
    %v254 = vpop.f32.mrb[0].mxu0
    %255 = vmatprep.mubr.f32.mxu0 0.0
    %256 = vmatmul.mubr.f32.gmra.mrb[0].mxu0 %v118
    %v257 = vpop.f32.mrb[0].mxu0
    %v258 = vadd.f32 0.0, %v257
    %v259 = vpop.f32.mrb[0].mxu0
    %260 = vmatprep.mubr.f32.mxu0 0.0
    %261 = vmatmul.mubr.f32.gmra.mrb[0].mxu0 %v121
    %v262 = vpop.f32.mrb[0].mxu0
    %v263 = vadd.f32 0.0, %v262
    %v264 = vpop.f32.mrb[0].mxu0
    %265 = vmatprep.mubr.f32.mxu0 0.0
    %266 = vmatmul.mubr.f32.gmra.mrb[0].mxu0 %v124
    %v267 = vpop.f32.mrb[0].mxu0
    %v268 = vadd.f32 0.0, %v267
    %v269 = vpop.f32.mrb[0].mxu0
    %270 = vdwg.mxu0
    %v271 = vtanh.pop %v193
    %v272 = vtanh.pop %v198
    %v273 = vtanh.pop %v203
    %v274 = vtanh.pop %v208
    %v275 = vtanh.pop %v213
    %v276 = vtanh.pop %v218
    %v277 = vtanh.pop %v223
    %v278 = vtanh.pop %v228
    %v279 = vtanh.pop %v233
    %v280 = vtanh.pop %v238
    %v281 = vtanh.pop %v243
    %v282 = vtanh.pop %v248
    %v283 = vtanh.pop %v253
    %v284 = vtanh.pop %v258
    %v285 = vtanh.pop %v263
    %v286 = vtanh.pop %v268
    %v288 = vlaneseq
    %v289 = vshrl.u32 %v288, 7
    %v290 = vsub.s32 0, %v289
    %v291 = vrot.slane %v74, %v290
    %v293 = vmul.f32 %v271, %v291
    %v294 = vmul.f32 %v272, %v291
    %v295 = vmul.f32 %v273, %v291
    %v296 = vmul.f32 %v274, %v291
    %v297 = vmul.f32 %v275, %v291
    %v298 = vmul.f32 %v276, %v291
    %v299 = vmul.f32 %v277, %v291
    %v300 = vmul.f32 %v278, %v291
    %v301 = vmul.f32 %v279, %v291
    %v302 = vmul.f32 %v280, %v291
    %v303 = vmul.f32 %v281, %v291
    %v304 = vmul.f32 %v282, %v291
    %v305 = vmul.f32 %v283, %v291
    %v306 = vmul.f32 %v284, %v291
    %v307 = vmul.f32 %v285, %v291
    %v308 = vmul.f32 %v286, %v291
    %v309 = vsel %vm77, %v293, 0.0
    %310 = vadd.xlane.f32.xlu0 %v309
    %v311 = vpop.xlane.xlu0 %310
    %v312 = vsel %vm77, %v294, 0.0
    %313 = vadd.xlane.f32.xlu0 %v312
    %v314 = vpop.xlane.xlu0 %313
    %v315 = vsel %vm77, %v295, 0.0
    %316 = vadd.xlane.f32.xlu0 %v315
    %v317 = vpop.xlane.xlu0 %316
    %v318 = vsel %vm77, %v296, 0.0
    %319 = vadd.xlane.f32.xlu0 %v318
    %v320 = vpop.xlane.xlu0 %319
    %v321 = vsel %vm77, %v297, 0.0
    %322 = vadd.xlane.f32.xlu0 %v321
    %v323 = vpop.xlane.xlu0 %322
    %v324 = vsel %vm77, %v298, 0.0
    %325 = vadd.xlane.f32.xlu0 %v324
    %v326 = vpop.xlane.xlu0 %325
    %v327 = vsel %vm77, %v299, 0.0
    %328 = vadd.xlane.f32.xlu0 %v327
    %v329 = vpop.xlane.xlu0 %328
    %v330 = vsel %vm77, %v300, 0.0
    %331 = vadd.xlane.f32.xlu0 %v330
    %v332 = vpop.xlane.xlu0 %331
    %v333 = vsel %vm77, %v301, 0.0
    %334 = vadd.xlane.f32.xlu0 %v333
    %v335 = vpop.xlane.xlu0 %334
    %v336 = vsel %vm77, %v302, 0.0
    %337 = vadd.xlane.f32.xlu0 %v336
    %v338 = vpop.xlane.xlu0 %337
    %v339 = vsel %vm77, %v303, 0.0
    %340 = vadd.xlane.f32.xlu0 %v339
    %v341 = vpop.xlane.xlu0 %340
    %v342 = vsel %vm77, %v304, 0.0
    %343 = vadd.xlane.f32.xlu0 %v342
    %v344 = vpop.xlane.xlu0 %343
    %v345 = vsel %vm77, %v305, 0.0
    %346 = vadd.xlane.f32.xlu0 %v345
    %v347 = vpop.xlane.xlu0 %346
    %v348 = vsel %vm77, %v306, 0.0
    %349 = vadd.xlane.f32.xlu0 %v348
    %v350 = vpop.xlane.xlu0 %349
    %v351 = vsel %vm77, %v307, 0.0
    %352 = vadd.xlane.f32.xlu0 %v351
    %v353 = vpop.xlane.xlu0 %352
    %v354 = vsel %vm77, %v308, 0.0
    %355 = vadd.xlane.f32.xlu0 %v354
    %v356 = vpop.xlane.xlu0 %355
    %v373 = vlaneseq
    %v374 = vand.u32 %v373, 127
    %v375 = vlaneseq
    %v376 = vshrl.u32 %v375, 7
    %v377 = vsub.s32 %v374, %v376
    %v378 = vrot.slane %v311, %v377
    %v379 = vadd.s32 %v374, 4294967288
    %v380 = vlaneseq
    %v381 = vshrl.u32 %v380, 7
    %v382 = vsub.s32 %v379, %v381
    %v383 = vrot.slane %v314, %v382
    %vm384 = vcmask 130112
    %v385 = vsel %vm384, %v383, %v378
    %v386 = vlaneseq
    %v387 = vshrl.u32 %v386, 7
    %v388 = vsub.s32 %v374, %v387
    %v389 = vrot.slane %v317, %v388
    %v390 = vlaneseq
    %v391 = vshrl.u32 %v390, 7
    %v392 = vsub.s32 %v379, %v391
    %v393 = vrot.slane %v320, %v392
    %v394 = vsel %vm384, %v393, %v389
    %v395 = vlaneseq
    %v396 = vshrl.u32 %v395, 7
    %v397 = vsub.s32 %v374, %v396
    %v398 = vrot.slane %v323, %v397
    %v399 = vlaneseq
    %v400 = vshrl.u32 %v399, 7
    %v401 = vsub.s32 %v379, %v400
    %v402 = vrot.slane %v326, %v401
    %v403 = vsel %vm384, %v402, %v398
    %v404 = vlaneseq
    %v405 = vshrl.u32 %v404, 7
    %v406 = vsub.s32 %v374, %v405
    %v407 = vrot.slane %v329, %v406
    %v408 = vlaneseq
    %v409 = vshrl.u32 %v408, 7
    %v410 = vsub.s32 %v379, %v409
    %v411 = vrot.slane %v332, %v410
    %v412 = vsel %vm384, %v411, %v407
    %v413 = vlaneseq
    %v414 = vshrl.u32 %v413, 7
    %v415 = vsub.s32 %v374, %v414
    %v416 = vrot.slane %v335, %v415
    %v417 = vlaneseq
    %v418 = vshrl.u32 %v417, 7
    %v419 = vsub.s32 %v379, %v418
    %v420 = vrot.slane %v338, %v419
    %v421 = vsel %vm384, %v420, %v416
    %v422 = vlaneseq
    %v423 = vshrl.u32 %v422, 7
    %v424 = vsub.s32 %v374, %v423
    %v425 = vrot.slane %v341, %v424
    %v426 = vlaneseq
    %v427 = vshrl.u32 %v426, 7
    %v428 = vsub.s32 %v379, %v427
    %v429 = vrot.slane %v344, %v428
    %v430 = vsel %vm384, %v429, %v425
    %v431 = vlaneseq
    %v432 = vshrl.u32 %v431, 7
    %v433 = vsub.s32 %v374, %v432
    %v434 = vrot.slane %v347, %v433
    %v435 = vlaneseq
    %v436 = vshrl.u32 %v435, 7
    %v437 = vsub.s32 %v379, %v436
    %v438 = vrot.slane %v350, %v437
    %v439 = vsel %vm384, %v438, %v434
    %v440 = vlaneseq
    %v441 = vshrl.u32 %v440, 7
    %v442 = vsub.s32 %v374, %v441
    %v443 = vrot.slane %v353, %v442
    %v444 = vlaneseq
    %v445 = vshrl.u32 %v444, 7
    %v446 = vsub.s32 %v379, %v445
    %v447 = vrot.slane %v356, %v446
    %v448 = vsel %vm384, %v447, %v443
    %vm449 = vcmask 1041409
    %v450 = vsel %vm449, %v394, %v385
    %vm451 = vcmask 1042434
    %v452 = vsel %vm451, %v403, %v450
    %vm453 = vcmask 1043459
    %v454 = vsel %vm453, %v412, %v452
    %vm455 = vcmask 1044484
    %v456 = vsel %vm455, %v421, %v454
    %vm457 = vcmask 1045509
    %v458 = vsel %vm457, %v430, %v456
    %vm459 = vcmask 1046534
    %v460 = vsel %vm459, %v439, %v458
    %vm461 = vcmask 1047559
    %v462 = vsel %vm461, %v448, %v460
    %vm464 = vcmask 130048
    %v465 = vsel %vm464, %v462, -inf
    %466 = vmax.xlane.f32.xlu0 %v465
    %v467 = vpop.xlane.xlu0 %466
    %v469 = vlaneseq
    %v470 = vshrl.u32 %v469, 7
    %v471 = vsub.s32 0, %v470
    %v472 = vrot.slane %v467, %v471
    %v473 = vlaneseq
    %v474 = vshrl.u32 %v473, 7
    %v475 = vsub.s32 1, %v474
    %v476 = vrot.slane %v467, %v475
    %v477 = vlaneseq
    %v478 = vshrl.u32 %v477, 7
    %v479 = vsub.s32 2, %v478
    %v480 = vrot.slane %v467, %v479
    %v481 = vlaneseq
    %v482 = vshrl.u32 %v481, 7
    %v483 = vsub.s32 3, %v482
    %v484 = vrot.slane %v467, %v483
    %v485 = vlaneseq
    %v486 = vshrl.u32 %v485, 7
    %v487 = vsub.s32 4, %v486
    %v488 = vrot.slane %v467, %v487
    %v489 = vlaneseq
    %v490 = vshrl.u32 %v489, 7
    %v491 = vsub.s32 5, %v490
    %v492 = vrot.slane %v467, %v491
    %v493 = vlaneseq
    %v494 = vshrl.u32 %v493, 7
    %v495 = vsub.s32 6, %v494
    %v496 = vrot.slane %v467, %v495
    %v497 = vlaneseq
    %v498 = vshrl.u32 %v497, 7
    %v499 = vsub.s32 7, %v498
    %v500 = vrot.slane %v467, %v499
    %v509 = vsub.f32 %v311, %v472
    %v510 = vsub.f32 %v314, %v472
    %v511 = vsub.f32 %v317, %v476
    %v512 = vsub.f32 %v320, %v476
    %v513 = vsub.f32 %v323, %v480
    %v514 = vsub.f32 %v326, %v480
    %v515 = vsub.f32 %v329, %v484
    %v516 = vsub.f32 %v332, %v484
    %v517 = vsub.f32 %v335, %v488
    %v518 = vsub.f32 %v338, %v488
    %v519 = vsub.f32 %v341, %v492
    %v520 = vsub.f32 %v344, %v492
    %v521 = vsub.f32 %v347, %v496
    %v522 = vsub.f32 %v350, %v496
    %v523 = vsub.f32 %v353, %v500
    %v524 = vsub.f32 %v356, %v500
    %v525 = vmul.f32 %v509, 1.442695
    %v526 = vpow.pop %v525
    %v527 = vmul.f32 %v510, 1.442695
    %v528 = vpow.pop %v527
    %v529 = vmul.f32 %v511, 1.442695
    %v530 = vpow.pop %v529
    %v531 = vmul.f32 %v512, 1.442695
    %v532 = vpow.pop %v531
    %v533 = vmul.f32 %v513, 1.442695
    %v534 = vpow.pop %v533
    %v535 = vmul.f32 %v514, 1.442695
    %v536 = vpow.pop %v535
    %v537 = vmul.f32 %v515, 1.442695
    %v538 = vpow.pop %v537
    %v539 = vmul.f32 %v516, 1.442695
    %v540 = vpow.pop %v539
    %v541 = vmul.f32 %v517, 1.442695
    %v542 = vpow.pop %v541
    %v543 = vmul.f32 %v518, 1.442695
    %v544 = vpow.pop %v543
    %v545 = vmul.f32 %v519, 1.442695
    %v546 = vpow.pop %v545
    %v547 = vmul.f32 %v520, 1.442695
    %v548 = vpow.pop %v547
    %v549 = vmul.f32 %v521, 1.442695
    %v550 = vpow.pop %v549
    %v551 = vmul.f32 %v522, 1.442695
    %v552 = vpow.pop %v551
    %v553 = vmul.f32 %v523, 1.442695
    %v554 = vpow.pop %v553
    %v555 = vmul.f32 %v524, 1.442695
    %v556 = vpow.pop %v555
    %573 = vset.pattern.permute.xlu0 0
    %574 = vperm.xlu0 %573, %v526
    %v575 = vpop.permute.xlu0 %574
    %576 = vset.pattern.permute.xlu0 0
    %577 = vperm.xlu0 %576, %v528
    %v578 = vpop.permute.xlu0 %577
    %579 = vset.pattern.permute.xlu0 0
    %580 = vperm.xlu0 %579, %v530
    %v581 = vpop.permute.xlu0 %580
    %582 = vset.pattern.permute.xlu0 0
    %583 = vperm.xlu0 %582, %v532
    %v584 = vpop.permute.xlu0 %583
    %585 = vset.pattern.permute.xlu0 0
    %586 = vperm.xlu0 %585, %v534
    %v587 = vpop.permute.xlu0 %586
    %588 = vset.pattern.permute.xlu0 0
    %589 = vperm.xlu0 %588, %v536
    %v590 = vpop.permute.xlu0 %589
    %591 = vset.pattern.permute.xlu0 0
    %592 = vperm.xlu0 %591, %v538
    %v593 = vpop.permute.xlu0 %592
    %594 = vset.pattern.permute.xlu0 0
    %595 = vperm.xlu0 %594, %v540
    %v596 = vpop.permute.xlu0 %595
    %597 = vset.pattern.permute.xlu0 0
    %598 = vperm.xlu0 %597, %v542
    %v599 = vpop.permute.xlu0 %598
    %600 = vset.pattern.permute.xlu0 0
    %601 = vperm.xlu0 %600, %v544
    %v602 = vpop.permute.xlu0 %601
    %603 = vset.pattern.permute.xlu0 0
    %604 = vperm.xlu0 %603, %v546
    %v605 = vpop.permute.xlu0 %604
    %606 = vset.pattern.permute.xlu0 0
    %607 = vperm.xlu0 %606, %v548
    %v608 = vpop.permute.xlu0 %607
    %609 = vset.pattern.permute.xlu0 0
    %610 = vperm.xlu0 %609, %v550
    %v611 = vpop.permute.xlu0 %610
    %612 = vset.pattern.permute.xlu0 0
    %613 = vperm.xlu0 %612, %v552
    %v614 = vpop.permute.xlu0 %613
    %615 = vset.pattern.permute.xlu0 0
    %616 = vperm.xlu0 %615, %v554
    %v617 = vpop.permute.xlu0 %616
    %618 = vset.pattern.permute.xlu0 0
    %619 = vperm.xlu0 %618, %v556
    %v620 = vpop.permute.xlu0 %619
    %v621 = vlaneseq
    %v622 = vshrl.u32 %v621, 7
    %v623 = vsub.s32 %v374, %v622
    %v624 = vrot.slane %v575, %v623
    %v625 = vlaneseq
    %v626 = vshrl.u32 %v625, 7
    %v627 = vsub.s32 %v379, %v626
    %v628 = vrot.slane %v578, %v627
    %v629 = vsel %vm384, %v628, %v624
    %v630 = vlaneseq
    %v631 = vshrl.u32 %v630, 7
    %v632 = vsub.s32 %v374, %v631
    %v633 = vrot.slane %v581, %v632
    %v634 = vlaneseq
    %v635 = vshrl.u32 %v634, 7
    %v636 = vsub.s32 %v379, %v635
    %v637 = vrot.slane %v584, %v636
    %v638 = vsel %vm384, %v637, %v633
    %v639 = vlaneseq
    %v640 = vshrl.u32 %v639, 7
    %v641 = vsub.s32 %v374, %v640
    %v642 = vrot.slane %v587, %v641
    %v643 = vlaneseq
    %v644 = vshrl.u32 %v643, 7
    %v645 = vsub.s32 %v379, %v644
    %v646 = vrot.slane %v590, %v645
    %v647 = vsel %vm384, %v646, %v642
    %v648 = vlaneseq
    %v649 = vshrl.u32 %v648, 7
    %v650 = vsub.s32 %v374, %v649
    %v651 = vrot.slane %v593, %v650
    %v652 = vlaneseq
    %v653 = vshrl.u32 %v652, 7
    %v654 = vsub.s32 %v379, %v653
    %v655 = vrot.slane %v596, %v654
    %v656 = vsel %vm384, %v655, %v651
    %v657 = vlaneseq
    %v658 = vshrl.u32 %v657, 7
    %v659 = vsub.s32 %v374, %v658
    %v660 = vrot.slane %v599, %v659
    %v661 = vlaneseq
    %v662 = vshrl.u32 %v661, 7
    %v663 = vsub.s32 %v379, %v662
    %v664 = vrot.slane %v602, %v663
    %v665 = vsel %vm384, %v664, %v660
    %v666 = vlaneseq
    %v667 = vshrl.u32 %v666, 7
    %v668 = vsub.s32 %v374, %v667
    %v669 = vrot.slane %v605, %v668
    %v670 = vlaneseq
    %v671 = vshrl.u32 %v670, 7
    %v672 = vsub.s32 %v379, %v671
    %v673 = vrot.slane %v608, %v672
    %v674 = vsel %vm384, %v673, %v669
    %v675 = vlaneseq
    %v676 = vshrl.u32 %v675, 7
    %v677 = vsub.s32 %v374, %v676
    %v678 = vrot.slane %v611, %v677
    %v679 = vlaneseq
    %v680 = vshrl.u32 %v679, 7
    %v681 = vsub.s32 %v379, %v680
    %v682 = vrot.slane %v614, %v681
    %v683 = vsel %vm384, %v682, %v678
    %v684 = vlaneseq
    %v685 = vshrl.u32 %v684, 7
    %v686 = vsub.s32 %v374, %v685
    %v687 = vrot.slane %v617, %v686
    %v688 = vlaneseq
    %v689 = vshrl.u32 %v688, 7
    %v690 = vsub.s32 %v379, %v689
    %v691 = vrot.slane %v620, %v690
    %v692 = vsel %vm384, %v691, %v687
    %v693 = vsel %vm449, %v638, %v629
    %v694 = vsel %vm451, %v647, %v693
    %v695 = vsel %vm453, %v656, %v694
    %v696 = vsel %vm455, %v665, %v695
    %v697 = vsel %vm457, %v674, %v696
    %v698 = vsel %vm459, %v683, %v697
    %v699 = vsel %vm461, %v692, %v698
    %v701 = vsel %vm464, %v699, 0.0
    %702 = vadd.xlane.f32.xlu0 %v701
    %v703 = vpop.xlane.xlu0 %702
    %v704 = vrcp.pop %v703
    %v706 = vlaneseq
    %v707 = vshrl.u32 %v706, 7
    %v708 = vsub.s32 0, %v707
    %v709 = vrot.slane %v704, %v708
    %v710 = vlaneseq
    %v711 = vshrl.u32 %v710, 7
    %v712 = vsub.s32 1, %v711
    %v713 = vrot.slane %v704, %v712
    %v714 = vlaneseq
    %v715 = vshrl.u32 %v714, 7
    %v716 = vsub.s32 2, %v715
    %v717 = vrot.slane %v704, %v716
    %v718 = vlaneseq
    %v719 = vshrl.u32 %v718, 7
    %v720 = vsub.s32 3, %v719
    %v721 = vrot.slane %v704, %v720
    %v722 = vlaneseq
    %v723 = vshrl.u32 %v722, 7
    %v724 = vsub.s32 4, %v723
    %v725 = vrot.slane %v704, %v724
    %v726 = vlaneseq
    %v727 = vshrl.u32 %v726, 7
    %v728 = vsub.s32 5, %v727
    %v729 = vrot.slane %v704, %v728
    %v730 = vlaneseq
    %v731 = vshrl.u32 %v730, 7
    %v732 = vsub.s32 6, %v731
    %v733 = vrot.slane %v704, %v732
    %v734 = vlaneseq
    %v735 = vshrl.u32 %v734, 7
    %v736 = vsub.s32 7, %v735
    %v737 = vrot.slane %v704, %v736
    %v746 = vmul.f32 %v526, %v709
    %v747 = vmul.f32 %v528, %v709
    %v748 = vmul.f32 %v530, %v713
    %v749 = vmul.f32 %v532, %v713
    %v750 = vmul.f32 %v534, %v717
    %v751 = vmul.f32 %v536, %v717
    %v752 = vmul.f32 %v538, %v721
    %v753 = vmul.f32 %v540, %v721
    %v754 = vmul.f32 %v542, %v725
    %v755 = vmul.f32 %v544, %v725
    %v756 = vmul.f32 %v546, %v729
    %v757 = vmul.f32 %v548, %v729
    %v758 = vmul.f32 %v550, %v733
    %v759 = vmul.f32 %v552, %v733
    %v760 = vmul.f32 %v554, %v737
    %v761 = vmul.f32 %v556, %v737
    %v763 = vlaneseq
    %v764 = vshrl.u32 %v763, 7
    %v765 = vsub.s32 0, %v764
    %v766 = vrot.slane %v75, %v765
    %768 = vbcast.lane.b32.xlu0 %v766, 256
    %v769 = vpop.permute.xlu0 %768
    %s771 = sor.u32 256, 8
    %772 = vbcast.lane.b32.xlu0 %v766, %s771
    %v773 = vpop.permute.xlu0 %772
    %v776 = vmul.f32 %v746, %v769
    %v777 = vmul.f32 %v747, %v773
    %v778 = vmul.f32 %v748, %v769
    %v779 = vmul.f32 %v749, %v773
    %v780 = vmul.f32 %v750, %v769
    %v781 = vmul.f32 %v751, %v773
    %v782 = vmul.f32 %v752, %v769
    %v783 = vmul.f32 %v753, %v773
    %v784 = vmul.f32 %v754, %v769
    %v785 = vmul.f32 %v755, %v773
    %v786 = vmul.f32 %v756, %v769
    %v787 = vmul.f32 %v757, %v773
    %v788 = vmul.f32 %v758, %v769
    %v789 = vmul.f32 %v759, %v773
    %v790 = vmul.f32 %v760, %v769
    %v791 = vmul.f32 %v761, %v773
    %793 = vset.pattern.permute.xlu0 0
    %794 = vperm.xlu0 %793, %v776
    %v795 = vpop.permute.xlu0 %794
    %798 = vset.pattern.permute.xlu0 0
    %799 = vperm.xlu0 %798, %v777
    %v800 = vpop.permute.xlu0 %799
    %803 = vset.pattern.permute.xlu0 0
    %804 = vperm.xlu0 %803, %v778
    %v805 = vpop.permute.xlu0 %804
    %808 = vset.pattern.permute.xlu0 0
    %809 = vperm.xlu0 %808, %v779
    %v810 = vpop.permute.xlu0 %809
    %813 = vset.pattern.permute.xlu0 0
    %814 = vperm.xlu0 %813, %v780
    %v815 = vpop.permute.xlu0 %814
    %818 = vset.pattern.permute.xlu0 0
    %819 = vperm.xlu0 %818, %v781
    %v820 = vpop.permute.xlu0 %819
    %823 = vset.pattern.permute.xlu0 0
    %824 = vperm.xlu0 %823, %v782
    %v825 = vpop.permute.xlu0 %824
    %828 = vset.pattern.permute.xlu0 0
    %829 = vperm.xlu0 %828, %v783
    %v830 = vpop.permute.xlu0 %829
    %833 = vset.pattern.permute.xlu0 0
    %834 = vperm.xlu0 %833, %v784
    %v835 = vpop.permute.xlu0 %834
    %838 = vset.pattern.permute.xlu0 0
    %839 = vperm.xlu0 %838, %v785
    %v840 = vpop.permute.xlu0 %839
    %843 = vset.pattern.permute.xlu0 0
    %844 = vperm.xlu0 %843, %v786
    %v845 = vpop.permute.xlu0 %844
    %848 = vset.pattern.permute.xlu0 0
    %849 = vperm.xlu0 %848, %v787
    %v850 = vpop.permute.xlu0 %849
    %853 = vset.pattern.permute.xlu0 0
    %854 = vperm.xlu0 %853, %v788
    %v855 = vpop.permute.xlu0 %854
    %858 = vset.pattern.permute.xlu0 0
    %859 = vperm.xlu0 %858, %v789
    %v860 = vpop.permute.xlu0 %859
    %863 = vset.pattern.permute.xlu0 0
    %864 = vperm.xlu0 %863, %v790
    %v865 = vpop.permute.xlu0 %864
    %868 = vset.pattern.permute.xlu0 0
    %869 = vperm.xlu0 %868, %v791
    %v870 = vpop.permute.xlu0 %869
    %v872 = vmul.f32 %v795, %v50
    %v873 = vmul.f32 %v800, %v51
    %v874 = vmul.f32 %v805, %v52
    %v875 = vmul.f32 %v810, %v53
    %v876 = vmul.f32 %v815, %v54
    %v877 = vmul.f32 %v820, %v55
    %v878 = vmul.f32 %v825, %v56
    %v879 = vmul.f32 %v830, %v57
    %v880 = vmul.f32 %v835, %v58
    %v881 = vmul.f32 %v840, %v59
    %v882 = vmul.f32 %v845, %v60
    %v883 = vmul.f32 %v850, %v61
    %v884 = vmul.f32 %v855, %v62
    %v885 = vmul.f32 %v860, %v63
    %v886 = vmul.f32 %v865, %v64
    %v887 = vmul.f32 %v870, %v65
    %v888 = vsel %vm77, %v872, 0.0
    %v889 = vsel %vm77, %v873, 0.0
    %v890 = vadd.f32 %v888, %v889
    %v891 = vrot.slane %v890, 4
    %v892 = vadd.f32 %v890, %v891
    %v893 = vrot.slane %v892, 2
    %v894 = vadd.f32 %v892, %v893
    %v895 = vrot.slane %v894, 1
    %v896 = vadd.f32 %v894, %v895
    %v897 = vsel %vm77, %v874, 0.0
    %v898 = vsel %vm77, %v875, 0.0
    %v899 = vadd.f32 %v897, %v898
    %v900 = vrot.slane %v899, 4
    %v901 = vadd.f32 %v899, %v900
    %v902 = vrot.slane %v901, 2
    %v903 = vadd.f32 %v901, %v902
    %v904 = vrot.slane %v903, 1
    %v905 = vadd.f32 %v903, %v904
    %v906 = vsel %vm77, %v876, 0.0
    %v907 = vsel %vm77, %v877, 0.0
    %v908 = vadd.f32 %v906, %v907
    %v909 = vrot.slane %v908, 4
    %v910 = vadd.f32 %v908, %v909
    %v911 = vrot.slane %v910, 2
    %v912 = vadd.f32 %v910, %v911
    %v913 = vrot.slane %v912, 1
    %v914 = vadd.f32 %v912, %v913
    %v915 = vsel %vm77, %v878, 0.0
    %v916 = vsel %vm77, %v879, 0.0
    %v917 = vadd.f32 %v915, %v916
    %v918 = vrot.slane %v917, 4
    %v919 = vadd.f32 %v917, %v918
    %v920 = vrot.slane %v919, 2
    %v921 = vadd.f32 %v919, %v920
    %v922 = vrot.slane %v921, 1
    %v923 = vadd.f32 %v921, %v922
    %v924 = vsel %vm77, %v880, 0.0
    %v925 = vsel %vm77, %v881, 0.0
    %v926 = vadd.f32 %v924, %v925
    %v927 = vrot.slane %v926, 4
    %v928 = vadd.f32 %v926, %v927
    %v929 = vrot.slane %v928, 2
    %v930 = vadd.f32 %v928, %v929
    %v931 = vrot.slane %v930, 1
    %v932 = vadd.f32 %v930, %v931
    %v933 = vsel %vm77, %v882, 0.0
    %v934 = vsel %vm77, %v883, 0.0
    %v935 = vadd.f32 %v933, %v934
    %v936 = vrot.slane %v935, 4
    %v937 = vadd.f32 %v935, %v936
    %v938 = vrot.slane %v937, 2
    %v939 = vadd.f32 %v937, %v938
    %v940 = vrot.slane %v939, 1
    %v941 = vadd.f32 %v939, %v940
    %v942 = vsel %vm77, %v884, 0.0
    %v943 = vsel %vm77, %v885, 0.0
    %v944 = vadd.f32 %v942, %v943
    %v945 = vrot.slane %v944, 4
    %v946 = vadd.f32 %v944, %v945
    %v947 = vrot.slane %v946, 2
    %v948 = vadd.f32 %v946, %v947
    %v949 = vrot.slane %v948, 1
    %v950 = vadd.f32 %v948, %v949
    %v951 = vsel %vm77, %v886, 0.0
    %v952 = vsel %vm77, %v887, 0.0
    %v953 = vadd.f32 %v951, %v952
    %v954 = vrot.slane %v953, 4
    %v955 = vadd.f32 %v953, %v954
    %v956 = vrot.slane %v955, 2
    %v957 = vadd.f32 %v955, %v956
    %v958 = vrot.slane %v957, 1
    %v959 = vadd.f32 %v957, %v958
    %v960 = vstv %s76
    %v961 = vadd.f32 %v896, %v960
    %v962 = vadd.f32 %v905, %v960
    %v963 = vadd.f32 %v914, %v960
    %v964 = vadd.f32 %v923, %v960
    %v965 = vadd.f32 %v932, %v960
    %v966 = vadd.f32 %v941, %v960
    %v967 = vadd.f32 %v950, %v960
    %v968 = vadd.f32 %v959, %v960
    %v977 = vsel %vm449, %v962, %v961
    %v978 = vsel %vm451, %v963, %v977
    %v979 = vsel %vm453, %v964, %v978
    %v980 = vsel %vm455, %v965, %v979
    %v981 = vsel %vm457, %v966, %v980
    %v982 = vsel %vm459, %v967, %v981
    %v983 = vsel %vm461, %v968, %v982
    %985 = vst.msk [vmem:[#allocation8] sm:$0xff] %vm77, %v983
    // Predicated region
    $region30: #{tpu_custom_call.1} parent=1 // pred_check
      _
    $region31: #{tpu_custom_call.1} parent=1 // pred_check_branch
      %987 = sbr.rel (0) target = $region33
    $region32: #{tpu_custom_call.1} parent=1 // pred_region
      %s989 = ssub.s32 128, 128
      %990 = vsyncadd [#allocation5], %s989
      %s992 = sshll.u32 [#allocation8], 4
      %s993 = int_to_ptr.vmem [resolvable:$true] %s992
      %995 = dma.vmem_to_hbm [thread:$0]  %s993, 128, %s5, [#allocation5]
    $region33: #{tpu_custom_call.1} parent=1 // pred_fallthru
      _
    // Predicated region
    $region34: #{tpu_custom_call.1} parent=1 // pred_check
      _
    $region35: #{tpu_custom_call.1} parent=1 // pred_check_branch
      %997 = sbr.rel (0) target = $region37
    $region36: #{tpu_custom_call.1} parent=1 // pred_region
      %998 = dma.done [#allocation5], 128
    $region37: #{tpu_custom_call.1} parent=1 // pred_fallthru
      _
    %999 = vsyncpa [#allocation4], 1
    %1000 = vsyncpa [#allocation7], 1
    %1001 = vsyncpa [#allocation5], 1

// kernel: tpu_custom_call.1
$region0: #{tpu_custom_call.1}
  #allocation0 [shape = 'u32[]', space=smem, size = 0x4, offset = 0x4, fixed_abs, tag = 'smem constant byte address 0x4 - core index']
  #allocation1 [shape = 'u32[144,128]{1,0:T(1,128)}', space=vmem, size = 0x12000, scoped, tag = 'internal scratch']
  #allocation2 [shape = 'f32[1]{0:T(128)S(6)}', space=smem, size = 0x200, scoped, tag = 'scoped memory for tpu_custom_call.1']
  %s0 = inlined_call_operand.hbm [shape: f32[8,16,64], index: 0, kind: input, shape index: {}]
  %s1 = inlined_call_operand.hbm [shape: f32[64,64], index: 1, kind: input, shape index: {}]
  %s2 = inlined_call_operand.vmem [shape: f32[1,64], index: 2, kind: input, shape index: {}]
  %s3 = inlined_call_operand.vmem [shape: f32[1,16], index: 3, kind: input, shape index: {}]
  %s4 = inlined_call_operand.<no memory space> [shape: f32[1], index: 4, kind: input, shape index: {}]
  %s5 = inlined_call_operand.hbm [shape: f32[8,64], index: 5, kind: output, shape index: {}]
  %s6 = sld [smem:[#allocation0]]
  $region38: #{tpu_custom_call.1} parent=0
    _
  %s8 = ssub.s32 1, %s6
  %s9 = scalar_select 0, %s8, %s6
  %10 = sst [smem:[#allocation2]] %s4
  $region1: #{tpu_custom_call.1} parent=0
    #allocation3 [shape = 'u8[65536]{0}', space=vmem, size = 0x10000, scoped, tag = 'input window, operand 0, single buffered']
    #allocation4 [shape = 's32[1]{0}', space=sflag, size = 0x4, scoped, tag = 'scoped memory for tpu_custom_call.1']
    #allocation5 [shape = 's32[1]{0}', space=sflag, size = 0x4, scoped, tag = 'scoped memory for tpu_custom_call.1']
    #allocation6 [shape = 'u8[32768]{0}', space=vmem, size = 0x8000, scoped, tag = 'input window, operand 1, single buffered']
    #allocation7 [shape = 's32[1]{0}', space=sflag, size = 0x4, scoped, tag = 'scoped memory for tpu_custom_call.1']
    #allocation8 [shape = 'u8[4096]{0}', space=vmem, size = 0x1000, scoped, tag = 'output window, operand 0, single buffered']
    %11 = vsyncpa [#allocation4], 0
    %12 = vsyncpa [#allocation7], 0
    %13 = vsyncpa [#allocation5], 0
    // Predicated region
    $region2: #{tpu_custom_call.1} parent=1 // pred_check
      _
    $region3: #{tpu_custom_call.1} parent=1 // pred_check_branch
      %15 = sbr.rel (0) target = $region5
    $region4: #{tpu_custom_call.1} parent=1 // pred_region
      %s17 = ssub.s32 2048, 2048
      %18 = vsyncadd [#allocation4], %s17
      %s19 = sshll.u32 [#allocation3], 4
      %s20 = int_to_ptr.vmem [resolvable:$true] %s19
      %25 = dma.hbm_to_vmem [thread:$0]  %s0, 2048, %s20, [#allocation4], 128, 128, 8
    $region5: #{tpu_custom_call.1} parent=1 // pred_fallthru
      _
    // Predicated region
    $region6: #{tpu_custom_call.1} parent=1 // pred_check
      _
    $region7: #{tpu_custom_call.1} parent=1 // pred_check_branch
      %27 = sbr.rel (0) target = $region9
    $region8: #{tpu_custom_call.1} parent=1 // pred_region
      %s29 = ssub.s32 1024, 1024
      %30 = vsyncadd [#allocation7], %s29
      %s31 = sshll.u32 [#allocation6], 4
      %s32 = int_to_ptr.vmem [resolvable:$true] %s31
      %37 = dma.hbm_to_vmem [thread:$0]  %s1, 1024, %s32, [#allocation7], 128, 128, 8
    $region9: #{tpu_custom_call.1} parent=1 // pred_fallthru
      _
    // Predicated region
    $region10: #{tpu_custom_call.1} parent=1 // pred_check
      _
    $region11: #{tpu_custom_call.1} parent=1 // pred_check_branch
      %39 = sbr.rel (0) target = $region13
    $region12: #{tpu_custom_call.1} parent=1 // pred_region
      _
    $region13: #{tpu_custom_call.1} parent=1 // pred_fallthru
      _
    // Predicated region
    $region14: #{tpu_custom_call.1} parent=1 // pred_check
      _
    $region15: #{tpu_custom_call.1} parent=1 // pred_check_branch
      %41 = sbr.rel (0) target = $region17
    $region16: #{tpu_custom_call.1} parent=1 // pred_region
      _
    $region17: #{tpu_custom_call.1} parent=1 // pred_fallthru
      _
    // Predicated region
    $region18: #{tpu_custom_call.1} parent=1 // pred_check
      _
    $region19: #{tpu_custom_call.1} parent=1 // pred_check_branch
      %43 = sbr.rel (0) target = $region21
    $region20: #{tpu_custom_call.1} parent=1 // pred_region
      _
    $region21: #{tpu_custom_call.1} parent=1 // pred_fallthru
      _
    // Predicated region
    $region22: #{tpu_custom_call.1} parent=1 // pred_check
      _
    $region23: #{tpu_custom_call.1} parent=1 // pred_check_branch
      %45 = sbr.rel (0) target = $region25
    $region24: #{tpu_custom_call.1} parent=1 // pred_region
      %46 = dma.done [#allocation4], 2048
    $region25: #{tpu_custom_call.1} parent=1 // pred_fallthru
      _
    // Predicated region
    $region26: #{tpu_custom_call.1} parent=1 // pred_check
      _
    $region27: #{tpu_custom_call.1} parent=1 // pred_check_branch
      %48 = sbr.rel (0) target = $region29
    $region28: #{tpu_custom_call.1} parent=1 // pred_region
      %49 = dma.done [#allocation7], 1024
    $region29: #{tpu_custom_call.1} parent=1 // pred_fallthru
      _
    %v50 = vld [vmem:[#allocation3] sm:$0xff]
    %v51 = vld [vmem:[#allocation3 + $0x8] sm:$0xff]
    %v52 = vld [vmem:[#allocation3 + $0x10] sm:$0xff]
    %v53 = vld [vmem:[#allocation3 + $0x18] sm:$0xff]
    %v54 = vld [vmem:[#allocation3 + $0x20] sm:$0xff]
    %v55 = vld [vmem:[#allocation3 + $0x28] sm:$0xff]
    %v56 = vld [vmem:[#allocation3 + $0x30] sm:$0xff]
    %v57 = vld [vmem:[#allocation3 + $0x38] sm:$0xff]
    %v58 = vld [vmem:[#allocation3 + $0x40] sm:$0xff]
    %v59 = vld [vmem:[#allocation3 + $0x48] sm:$0xff]
    %v60 = vld [vmem:[#allocation3 + $0x50] sm:$0xff]
    %v61 = vld [vmem:[#allocation3 + $0x58] sm:$0xff]
    %v62 = vld [vmem:[#allocation3 + $0x60] sm:$0xff]
    %v63 = vld [vmem:[#allocation3 + $0x68] sm:$0xff]
    %v64 = vld [vmem:[#allocation3 + $0x70] sm:$0xff]
    %v65 = vld [vmem:[#allocation3 + $0x78] sm:$0xff]
    %v66 = vld [vmem:[#allocation6] sm:$0xff]
    %v67 = vld [vmem:[#allocation6 + $0x8] sm:$0xff]
    %v68 = vld [vmem:[#allocation6 + $0x10] sm:$0xff]
    %v69 = vld [vmem:[#allocation6 + $0x18] sm:$0xff]
    %v70 = vld [vmem:[#allocation6 + $0x20] sm:$0xff]
    %v71 = vld [vmem:[#allocation6 + $0x28] sm:$0xff]
    %v72 = vld [vmem:[#allocation6 + $0x30] sm:$0xff]
    %v73 = vld [vmem:[#allocation6 + $0x38] sm:$0xff]
    %v74 = vld [vmem:[%s2] sm:$0x1]
    %v75 = vld [vmem:[%s3] sm:$0x1]
    %s76 = sld [smem:[#allocation2]]
    %vm77 = vcmask 523264
    %v79 = vsel %vm77, %v50, 0
    %v82 = vsel %vm77, %v51, 0
    %v85 = vsel %vm77, %v52, 0
    %v88 = vsel %vm77, %v53, 0
    %v91 = vsel %vm77, %v54, 0
    %v94 = vsel %vm77, %v55, 0
    %v97 = vsel %vm77, %v56, 0
    %v100 = vsel %vm77, %v57, 0
    %v103 = vsel %vm77, %v58, 0
    %v106 = vsel %vm77, %v59, 0
    %v109 = vsel %vm77, %v60, 0
    %v112 = vsel %vm77, %v61, 0
    %v115 = vsel %vm77, %v62, 0
    %v118 = vsel %vm77, %v63, 0
    %v121 = vsel %vm77, %v64, 0
    %v124 = vsel %vm77, %v65, 0
    %126 = vmatprep.subr.mxu0 0.0
    %127 = vmatpush1.msra.mxu0 %v66
    %128 = vmatprep.subr.mxu0 0.0
    %129 = vmatpush1.msra.mxu0 %v67
    %130 = vmatprep.subr.mxu0 0.0
    %131 = vmatpush1.msra.mxu0 %v68
    %132 = vmatprep.subr.mxu0 0.0
    %133 = vmatpush1.msra.mxu0 %v69
    %134 = vmatprep.subr.mxu0 0.0
    %135 = vmatpush1.msra.mxu0 %v70
    %136 = vmatprep.subr.mxu0 0.0
    %137 = vmatpush1.msra.mxu0 %v71
    %138 = vmatprep.subr.mxu0 0.0
    %139 = vmatpush1.msra.mxu0 %v72
    %140 = vmatprep.subr.mxu0 0.0
    %141 = vmatpush1.msra.mxu0 %v73
    %142 = vmatprep.subr.mxu0 0.0
    %143 = vmatpush1.msra.mxu0 0.0
    %144 = vmatprep.subr.mxu0 0.0
    %145 = vmatpush1.msra.mxu0 0.0
    %146 = vmatprep.subr.mxu0 0.0
    %147 = vmatpush1.msra.mxu0 0.0
    %148 = vmatprep.subr.mxu0 0.0
    %149 = vmatpush1.msra.mxu0 0.0
    %150 = vmatprep.subr.mxu0 0.0
    %151 = vmatpush1.msra.mxu0 0.0
    %152 = vmatprep.subr.mxu0 0.0
    %153 = vmatpush1.msra.mxu0 0.0
    %154 = vmatprep.subr.mxu0 0.0
    %155 = vmatpush1.msra.mxu0 0.0
    %156 = vmatprep.subr.mxu0 0.0
    %157 = vmatpush1.msra.mxu0 0.0
    %158 = vmatprep.subr.mxu0 0.0
    %159 = vmatpush1.msra.mxu0 0.0
    %160 = vmatprep.subr.mxu0 0.0
    %161 = vmatpush1.msra.mxu0 0.0
    %162 = vmatprep.subr.mxu0 0.0
    %163 = vmatpush1.msra.mxu0 0.0
    %164 = vmatprep.subr.mxu0 0.0
    %165 = vmatpush1.msra.mxu0 0.0
    %166 = vmatprep.subr.mxu0 0.0
    %167 = vmatpush1.msra.mxu0 0.0
    %168 = vmatprep.subr.mxu0 0.0
    %169 = vmatpush1.msra.mxu0 0.0
    %170 = vmatprep.subr.mxu0 0.0
    %171 = vmatpush1.msra.mxu0 0.0
    %172 = vmatprep.subr.mxu0 0.0
    %173 = vmatpush1.msra.mxu0 0.0
    %174 = vmatprep.subr.mxu0 0.0
    %175 = vmatpush1.msra.mxu0 0.0
    %176 = vmatprep.subr.mxu0 0.0
    %177 = vmatpush1.msra.mxu0 0.0
    %178 = vmatprep.subr.mxu0 0.0
    %179 = vmatpush1.msra.mxu0 0.0
    %180 = vmatprep.subr.mxu0 0.0
    %181 = vmatpush1.msra.mxu0 0.0
    %182 = vmatprep.subr.mxu0 0.0
    %183 = vmatpush1.msra.mxu0 0.0
    %184 = vmatprep.subr.mxu0 0.0
    %185 = vmatpush1.msra.mxu0 0.0
    %186 = vmatprep.subr.mxu0 0.0
    %187 = vmatpush1.msra.mxu0 0.0
    %188 = vmatprep.subr.mxu0 0.0
    %189 = vmatpush1.msra.mxu0 0.0
    %190 = vmatprep.mubr.f32.mxu0 0.0
    %191 = vmatmul.mubr.f32.gmra.mrb[0].mxu0 %v79
    %v192 = vpop.f32.mrb[0].mxu0
    %v193 = vadd.f32 0.0, %v192
    %v194 = vpop.f32.mrb[0].mxu0
    %195 = vmatprep.mubr.f32.mxu0 0.0
    %196 = vmatmul.mubr.f32.gmra.mrb[0].mxu0 %v82
    %v197 = vpop.f32.mrb[0].mxu0
    %v198 = vadd.f32 0.0, %v197
    %v199 = vpop.f32.mrb[0].mxu0
    %200 = vmatprep.mubr.f32.mxu0 0.0
    %201 = vmatmul.mubr.f32.gmra.mrb[0].mxu0 %v85
    %v202 = vpop.f32.mrb[0].mxu0
    %v203 = vadd.f32 0.0, %v202
    %v204 = vpop.f32.mrb[0].mxu0
    %205 = vmatprep.mubr.f32.mxu0 0.0
    %206 = vmatmul.mubr.f32.gmra.mrb[0].mxu0 %v88
    %v207 = vpop.f32.mrb[0].mxu0
    %v208 = vadd.f32 0.0, %v207
    %v209 = vpop.f32.mrb[0].mxu0
    %210 = vmatprep.mubr.f32.mxu0 0.0
    %211 = vmatmul.mubr.f32.gmra.mrb[0].mxu0 %v91
    %v212 = vpop.f32.mrb[0].mxu0
    %v213 = vadd.f32 0.0, %v212
    %v214 = vpop.f32.mrb[0].mxu0
    %215 = vmatprep.mubr.f32.mxu0 0.0
    %216 = vmatmul.mubr.f32.gmra.mrb[0].mxu0 %v94
    %v217 = vpop.f32.mrb[0].mxu0
    %v218 = vadd.f32 0.0, %v217
    %v219 = vpop.f32.mrb[0].mxu0
    %220 = vmatprep.mubr.f32.mxu0 0.0
    %221 = vmatmul.mubr.f32.gmra.mrb[0].mxu0 %v97
    %v222 = vpop.f32.mrb[0].mxu0
    %v223 = vadd.f32 0.0, %v222
    %v224 = vpop.f32.mrb[0].mxu0
    %225 = vmatprep.mubr.f32.mxu0 0.0
    %226 = vmatmul.mubr.f32.gmra.mrb[0].mxu0 %v100
    %v227 = vpop.f32.mrb[0].mxu0
    %v228 = vadd.f32 0.0, %v227
    %v229 = vpop.f32.mrb[0].mxu0
    %230 = vmatprep.mubr.f32.mxu0 0.0
    %231 = vmatmul.mubr.f32.gmra.mrb[0].mxu0 %v103
    %v232 = vpop.f32.mrb[0].mxu0
    %v233 = vadd.f32 0.0, %v232
    %v234 = vpop.f32.mrb[0].mxu0
    %235 = vmatprep.mubr.f32.mxu0 0.0
    %236 = vmatmul.mubr.f32.gmra.mrb[0].mxu0 %v106
    %v237 = vpop.f32.mrb[0].mxu0
    %v238 = vadd.f32 0.0, %v237
    %v239 = vpop.f32.mrb[0].mxu0
    %240 = vmatprep.mubr.f32.mxu0 0.0
    %241 = vmatmul.mubr.f32.gmra.mrb[0].mxu0 %v109
    %v242 = vpop.f32.mrb[0].mxu0
    %v243 = vadd.f32 0.0, %v242
    %v244 = vpop.f32.mrb[0].mxu0
    %245 = vmatprep.mubr.f32.mxu0 0.0
    %246 = vmatmul.mubr.f32.gmra.mrb[0].mxu0 %v112
    %v247 = vpop.f32.mrb[0].mxu0
    %v248 = vadd.f32 0.0, %v247
    %v249 = vpop.f32.mrb[0].mxu0
    %250 = vmatprep.mubr.f32.mxu0 0.0
    %251 = vmatmul.mubr.f32.gmra.mrb[0].mxu0 %v115
    %v252 = vpop.f32.mrb[0].mxu0
    %v253 = vadd.f32 0.0, %v252
    %v254 = vpop.f32.mrb[0].mxu0
    %255 = vmatprep.mubr.f32.mxu0 0.0
    %256 = vmatmul.mubr.f32.gmra.mrb[0].mxu0 %v118
    %v257 = vpop.f32.mrb[0].mxu0
    %v258 = vadd.f32 0.0, %v257
    %v259 = vpop.f32.mrb[0].mxu0
    %260 = vmatprep.mubr.f32.mxu0 0.0
    %261 = vmatmul.mubr.f32.gmra.mrb[0].mxu0 %v121
    %v262 = vpop.f32.mrb[0].mxu0
    %v263 = vadd.f32 0.0, %v262
    %v264 = vpop.f32.mrb[0].mxu0
    %265 = vmatprep.mubr.f32.mxu0 0.0
    %266 = vmatmul.mubr.f32.gmra.mrb[0].mxu0 %v124
    %v267 = vpop.f32.mrb[0].mxu0
    %v268 = vadd.f32 0.0, %v267
    %v269 = vpop.f32.mrb[0].mxu0
    %270 = vdwg.mxu0
    %v271 = vtanh.pop %v193
    %v272 = vtanh.pop %v198
    %v273 = vtanh.pop %v203
    %v274 = vtanh.pop %v208
    %v275 = vtanh.pop %v213
    %v276 = vtanh.pop %v218
    %v277 = vtanh.pop %v223
    %v278 = vtanh.pop %v228
    %v279 = vtanh.pop %v233
    %v280 = vtanh.pop %v238
    %v281 = vtanh.pop %v243
    %v282 = vtanh.pop %v248
    %v283 = vtanh.pop %v253
    %v284 = vtanh.pop %v258
    %v285 = vtanh.pop %v263
    %v286 = vtanh.pop %v268
    %v288 = vlaneseq
    %v289 = vshrl.u32 %v288, 7
    %v290 = vsub.s32 0, %v289
    %v291 = vrot.slane %v74, %v290
    %v293 = vmul.f32 %v271, %v291
    %v294 = vmul.f32 %v272, %v291
    %v295 = vmul.f32 %v273, %v291
    %v296 = vmul.f32 %v274, %v291
    %v297 = vmul.f32 %v275, %v291
    %v298 = vmul.f32 %v276, %v291
    %v299 = vmul.f32 %v277, %v291
    %v300 = vmul.f32 %v278, %v291
    %v301 = vmul.f32 %v279, %v291
    %v302 = vmul.f32 %v280, %v291
    %v303 = vmul.f32 %v281, %v291
    %v304 = vmul.f32 %v282, %v291
    %v305 = vmul.f32 %v283, %v291
    %v306 = vmul.f32 %v284, %v291
    %v307 = vmul.f32 %v285, %v291
    %v308 = vmul.f32 %v286, %v291
    %v309 = vsel %vm77, %v293, 0.0
    %310 = vadd.xlane.f32.xlu0 %v309
    %v311 = vpop.xlane.xlu0 %310
    %v312 = vsel %vm77, %v294, 0.0
    %313 = vadd.xlane.f32.xlu0 %v312
    %v314 = vpop.xlane.xlu0 %313
    %v315 = vsel %vm77, %v295, 0.0
    %316 = vadd.xlane.f32.xlu0 %v315
    %v317 = vpop.xlane.xlu0 %316
    %v318 = vsel %vm77, %v296, 0.0
    %319 = vadd.xlane.f32.xlu0 %v318
    %v320 = vpop.xlane.xlu0 %319
    %v321 = vsel %vm77, %v297, 0.0
    %322 = vadd.xlane.f32.xlu0 %v321
    %v323 = vpop.xlane.xlu0 %322
    %v324 = vsel %vm77, %v298, 0.0
    %325 = vadd.xlane.f32.xlu0 %v324
    %v326 = vpop.xlane.xlu0 %325
    %v327 = vsel %vm77, %v299, 0.0
    %328 = vadd.xlane.f32.xlu0 %v327
    %v329 = vpop.xlane.xlu0 %328
    %v330 = vsel %vm77, %v300, 0.0
    %331 = vadd.xlane.f32.xlu0 %v330
    %v332 = vpop.xlane.xlu0 %331
    %v333 = vsel %vm77, %v301, 0.0
    %334 = vadd.xlane.f32.xlu0 %v333
    %v335 = vpop.xlane.xlu0 %334
    %v336 = vsel %vm77, %v302, 0.0
    %337 = vadd.xlane.f32.xlu0 %v336
    %v338 = vpop.xlane.xlu0 %337
    %v339 = vsel %vm77, %v303, 0.0
    %340 = vadd.xlane.f32.xlu0 %v339
    %v341 = vpop.xlane.xlu0 %340
    %v342 = vsel %vm77, %v304, 0.0
    %343 = vadd.xlane.f32.xlu0 %v342
    %v344 = vpop.xlane.xlu0 %343
    %v345 = vsel %vm77, %v305, 0.0
    %346 = vadd.xlane.f32.xlu0 %v345
    %v347 = vpop.xlane.xlu0 %346
    %v348 = vsel %vm77, %v306, 0.0
    %349 = vadd.xlane.f32.xlu0 %v348
    %v350 = vpop.xlane.xlu0 %349
    %v351 = vsel %vm77, %v307, 0.0
    %352 = vadd.xlane.f32.xlu0 %v351
    %v353 = vpop.xlane.xlu0 %352
    %v354 = vsel %vm77, %v308, 0.0
    %355 = vadd.xlane.f32.xlu0 %v354
    %v356 = vpop.xlane.xlu0 %355
    %v373 = vlaneseq
    %v374 = vand.u32 %v373, 127
    %v375 = vlaneseq
    %v376 = vshrl.u32 %v375, 7
    %v377 = vsub.s32 %v374, %v376
    %v378 = vrot.slane %v311, %v377
    %v379 = vadd.s32 %v374, 4294967288
    %v380 = vlaneseq
    %v381 = vshrl.u32 %v380, 7
    %v382 = vsub.s32 %v379, %v381
    %v383 = vrot.slane %v314, %v382
    %vm384 = vcmask 130112
    %v385 = vsel %vm384, %v383, %v378
    %v386 = vlaneseq
    %v387 = vshrl.u32 %v386, 7
    %v388 = vsub.s32 %v374, %v387
    %v389 = vrot.slane %v317, %v388
    %v390 = vlaneseq
    %v391 = vshrl.u32 %v390, 7
    %v392 = vsub.s32 %v379, %v391
    %v393 = vrot.slane %v320, %v392
    %v394 = vsel %vm384, %v393, %v389
    %v395 = vlaneseq
    %v396 = vshrl.u32 %v395, 7
    %v397 = vsub.s32 %v374, %v396
    %v398 = vrot.slane %v323, %v397
    %v399 = vlaneseq
    %v400 = vshrl.u32 %v399, 7
    %v401 = vsub.s32 %v379, %v400
    %v402 = vrot.slane %v326, %v401
    %v403 = vsel %vm384, %v402, %v398
    %v404 = vlaneseq
    %v405 = vshrl.u32 %v404, 7
    %v406 = vsub.s32 %v374, %v405
    %v407 = vrot.slane %v329, %v406
    %v408 = vlaneseq
    %v409 = vshrl.u32 %v408, 7
    %v410 = vsub.s32 %v379, %v409
    %v411 = vrot.slane %v332, %v410
    %v412 = vsel %vm384, %v411, %v407
    %v413 = vlaneseq
    %v414 = vshrl.u32 %v413, 7
    %v415 = vsub.s32 %v374, %v414
    %v416 = vrot.slane %v335, %v415
    %v417 = vlaneseq
    %v418 = vshrl.u32 %v417, 7
    %v419 = vsub.s32 %v379, %v418
    %v420 = vrot.slane %v338, %v419
    %v421 = vsel %vm384, %v420, %v416
    %v422 = vlaneseq
    %v423 = vshrl.u32 %v422, 7
    %v424 = vsub.s32 %v374, %v423
    %v425 = vrot.slane %v341, %v424
    %v426 = vlaneseq
    %v427 = vshrl.u32 %v426, 7
    %v428 = vsub.s32 %v379, %v427
    %v429 = vrot.slane %v344, %v428
    %v430 = vsel %vm384, %v429, %v425
    %v431 = vlaneseq
    %v432 = vshrl.u32 %v431, 7
    %v433 = vsub.s32 %v374, %v432
    %v434 = vrot.slane %v347, %v433
    %v435 = vlaneseq
    %v436 = vshrl.u32 %v435, 7
    %v437 = vsub.s32 %v379, %v436
    %v438 = vrot.slane %v350, %v437
    %v439 = vsel %vm384, %v438, %v434
    %v440 = vlaneseq
    %v441 = vshrl.u32 %v440, 7
    %v442 = vsub.s32 %v374, %v441
    %v443 = vrot.slane %v353, %v442
    %v444 = vlaneseq
    %v445 = vshrl.u32 %v444, 7
    %v446 = vsub.s32 %v379, %v445
    %v447 = vrot.slane %v356, %v446
    %v448 = vsel %vm384, %v447, %v443
    %vm449 = vcmask 1041409
    %v450 = vsel %vm449, %v394, %v385
    %vm451 = vcmask 1042434
    %v452 = vsel %vm451, %v403, %v450
    %vm453 = vcmask 1043459
    %v454 = vsel %vm453, %v412, %v452
    %vm455 = vcmask 1044484
    %v456 = vsel %vm455, %v421, %v454
    %vm457 = vcmask 1045509
    %v458 = vsel %vm457, %v430, %v456
    %vm459 = vcmask 1046534
    %v460 = vsel %vm459, %v439, %v458
    %vm461 = vcmask 1047559
    %v462 = vsel %vm461, %v448, %v460
    %vm464 = vcmask 130048
    %v465 = vsel %vm464, %v462, -inf
    %466 = vmax.xlane.f32.xlu0 %v465
    %v467 = vpop.xlane.xlu0 %466
    %v469 = vlaneseq
    %v470 = vshrl.u32 %v469, 7
    %v471 = vsub.s32 0, %v470
    %v472 = vrot.slane %v467, %v471
    %v473 = vlaneseq
    %v474 = vshrl.u32 %v473, 7
    %v475 = vsub.s32 1, %v474
    %v476 = vrot.slane %v467, %v475
    %v477 = vlaneseq
    %v478 = vshrl.u32 %v477, 7
    %v479 = vsub.s32 2, %v478
    %v480 = vrot.slane %v467, %v479
    %v481 = vlaneseq
    %v482 = vshrl.u32 %v481, 7
    %v483 = vsub.s32 3, %v482
    %v484 = vrot.slane %v467, %v483
    %v485 = vlaneseq
    %v486 = vshrl.u32 %v485, 7
    %v487 = vsub.s32 4, %v486
    %v488 = vrot.slane %v467, %v487
    %v489 = vlaneseq
    %v490 = vshrl.u32 %v489, 7
    %v491 = vsub.s32 5, %v490
    %v492 = vrot.slane %v467, %v491
    %v493 = vlaneseq
    %v494 = vshrl.u32 %v493, 7
    %v495 = vsub.s32 6, %v494
    %v496 = vrot.slane %v467, %v495
    %v497 = vlaneseq
    %v498 = vshrl.u32 %v497, 7
    %v499 = vsub.s32 7, %v498
    %v500 = vrot.slane %v467, %v499
    %v509 = vsub.f32 %v311, %v472
    %v510 = vsub.f32 %v314, %v472
    %v511 = vsub.f32 %v317, %v476
    %v512 = vsub.f32 %v320, %v476
    %v513 = vsub.f32 %v323, %v480
    %v514 = vsub.f32 %v326, %v480
    %v515 = vsub.f32 %v329, %v484
    %v516 = vsub.f32 %v332, %v484
    %v517 = vsub.f32 %v335, %v488
    %v518 = vsub.f32 %v338, %v488
    %v519 = vsub.f32 %v341, %v492
    %v520 = vsub.f32 %v344, %v492
    %v521 = vsub.f32 %v347, %v496
    %v522 = vsub.f32 %v350, %v496
    %v523 = vsub.f32 %v353, %v500
    %v524 = vsub.f32 %v356, %v500
    %v525 = vmul.f32 %v509, 1.442695
    %v526 = vpow.pop %v525
    %v527 = vmul.f32 %v510, 1.442695
    %v528 = vpow.pop %v527
    %v529 = vmul.f32 %v511, 1.442695
    %v530 = vpow.pop %v529
    %v531 = vmul.f32 %v512, 1.442695
    %v532 = vpow.pop %v531
    %v533 = vmul.f32 %v513, 1.442695
    %v534 = vpow.pop %v533
    %v535 = vmul.f32 %v514, 1.442695
    %v536 = vpow.pop %v535
    %v537 = vmul.f32 %v515, 1.442695
    %v538 = vpow.pop %v537
    %v539 = vmul.f32 %v516, 1.442695
    %v540 = vpow.pop %v539
    %v541 = vmul.f32 %v517, 1.442695
    %v542 = vpow.pop %v541
    %v543 = vmul.f32 %v518, 1.442695
    %v544 = vpow.pop %v543
    %v545 = vmul.f32 %v519, 1.442695
    %v546 = vpow.pop %v545
    %v547 = vmul.f32 %v520, 1.442695
    %v548 = vpow.pop %v547
    %v549 = vmul.f32 %v521, 1.442695
    %v550 = vpow.pop %v549
    %v551 = vmul.f32 %v522, 1.442695
    %v552 = vpow.pop %v551
    %v553 = vmul.f32 %v523, 1.442695
    %v554 = vpow.pop %v553
    %v555 = vmul.f32 %v524, 1.442695
    %v556 = vpow.pop %v555
    %573 = vset.pattern.permute.xlu0 0
    %574 = vperm.xlu0 %573, %v526
    %v575 = vpop.permute.xlu0 %574
    %576 = vset.pattern.permute.xlu0 0
    %577 = vperm.xlu0 %576, %v528
    %v578 = vpop.permute.xlu0 %577
    %579 = vset.pattern.permute.xlu0 0
    %580 = vperm.xlu0 %579, %v530
    %v581 = vpop.permute.xlu0 %580
    %582 = vset.pattern.permute.xlu0 0
    %583 = vperm.xlu0 %582, %v532
    %v584 = vpop.permute.xlu0 %583
    %585 = vset.pattern.permute.xlu0 0
    %586 = vperm.xlu0 %585, %v534
    %v587 = vpop.permute.xlu0 %586
    %588 = vset.pattern.permute.xlu0 0
    %589 = vperm.xlu0 %588, %v536
    %v590 = vpop.permute.xlu0 %589
    %591 = vset.pattern.permute.xlu0 0
    %592 = vperm.xlu0 %591, %v538
    %v593 = vpop.permute.xlu0 %592
    %594 = vset.pattern.permute.xlu0 0
    %595 = vperm.xlu0 %594, %v540
    %v596 = vpop.permute.xlu0 %595
    %597 = vset.pattern.permute.xlu0 0
    %598 = vperm.xlu0 %597, %v542
    %v599 = vpop.permute.xlu0 %598
    %600 = vset.pattern.permute.xlu0 0
    %601 = vperm.xlu0 %600, %v544
    %v602 = vpop.permute.xlu0 %601
    %603 = vset.pattern.permute.xlu0 0
    %604 = vperm.xlu0 %603, %v546
    %v605 = vpop.permute.xlu0 %604
    %606 = vset.pattern.permute.xlu0 0
    %607 = vperm.xlu0 %606, %v548
    %v608 = vpop.permute.xlu0 %607
    %609 = vset.pattern.permute.xlu0 0
    %610 = vperm.xlu0 %609, %v550
    %v611 = vpop.permute.xlu0 %610
    %612 = vset.pattern.permute.xlu0 0
    %613 = vperm.xlu0 %612, %v552
    %v614 = vpop.permute.xlu0 %613
    %615 = vset.pattern.permute.xlu0 0
    %616 = vperm.xlu0 %615, %v554
    %v617 = vpop.permute.xlu0 %616
    %618 = vset.pattern.permute.xlu0 0
    %619 = vperm.xlu0 %618, %v556
    %v620 = vpop.permute.xlu0 %619
    %v621 = vlaneseq
    %v622 = vshrl.u32 %v621, 7
    %v623 = vsub.s32 %v374, %v622
    %v624 = vrot.slane %v575, %v623
    %v625 = vlaneseq
    %v626 = vshrl.u32 %v625, 7
    %v627 = vsub.s32 %v379, %v626
    %v628 = vrot.slane %v578, %v627
    %v629 = vsel %vm384, %v628, %v624
    %v630 = vlaneseq
    %v631 = vshrl.u32 %v630, 7
    %v632 = vsub.s32 %v374, %v631
    %v633 = vrot.slane %v581, %v632
    %v634 = vlaneseq
    %v635 = vshrl.u32 %v634, 7
    %v636 = vsub.s32 %v379, %v635
    %v637 = vrot.slane %v584, %v636
    %v638 = vsel %vm384, %v637, %v633
    %v639 = vlaneseq
    %v640 = vshrl.u32 %v639, 7
    %v641 = vsub.s32 %v374, %v640
    %v642 = vrot.slane %v587, %v641
    %v643 = vlaneseq
    %v644 = vshrl.u32 %v643, 7
    %v645 = vsub.s32 %v379, %v644
    %v646 = vrot.slane %v590, %v645
    %v647 = vsel %vm384, %v646, %v642
    %v648 = vlaneseq
    %v649 = vshrl.u32 %v648, 7
    %v650 = vsub.s32 %v374, %v649
    %v651 = vrot.slane %v593, %v650
    %v652 = vlaneseq
    %v653 = vshrl.u32 %v652, 7
    %v654 = vsub.s32 %v379, %v653
    %v655 = vrot.slane %v596, %v654
    %v656 = vsel %vm384, %v655, %v651
    %v657 = vlaneseq
    %v658 = vshrl.u32 %v657, 7
    %v659 = vsub.s32 %v374, %v658
    %v660 = vrot.slane %v599, %v659
    %v661 = vlaneseq
    %v662 = vshrl.u32 %v661, 7
    %v663 = vsub.s32 %v379, %v662
    %v664 = vrot.slane %v602, %v663
    %v665 = vsel %vm384, %v664, %v660
    %v666 = vlaneseq
    %v667 = vshrl.u32 %v666, 7
    %v668 = vsub.s32 %v374, %v667
    %v669 = vrot.slane %v605, %v668
    %v670 = vlaneseq
    %v671 = vshrl.u32 %v670, 7
    %v672 = vsub.s32 %v379, %v671
    %v673 = vrot.slane %v608, %v672
    %v674 = vsel %vm384, %v673, %v669
    %v675 = vlaneseq
    %v676 = vshrl.u32 %v675, 7
    %v677 = vsub.s32 %v374, %v676
    %v678 = vrot.slane %v611, %v677
    %v679 = vlaneseq
    %v680 = vshrl.u32 %v679, 7
    %v681 = vsub.s32 %v379, %v680
    %v682 = vrot.slane %v614, %v681
    %v683 = vsel %vm384, %v682, %v678
    %v684 = vlaneseq
    %v685 = vshrl.u32 %v684, 7
    %v686 = vsub.s32 %v374, %v685
    %v687 = vrot.slane %v617, %v686
    %v688 = vlaneseq
    %v689 = vshrl.u32 %v688, 7
    %v690 = vsub.s32 %v379, %v689
    %v691 = vrot.slane %v620, %v690
    %v692 = vsel %vm384, %v691, %v687
    %v693 = vsel %vm449, %v638, %v629
    %v694 = vsel %vm451, %v647, %v693
    %v695 = vsel %vm453, %v656, %v694
    %v696 = vsel %vm455, %v665, %v695
    %v697 = vsel %vm457, %v674, %v696
    %v698 = vsel %vm459, %v683, %v697
    %v699 = vsel %vm461, %v692, %v698
    %v701 = vsel %vm464, %v699, 0.0
    %702 = vadd.xlane.f32.xlu0 %v701
    %v703 = vpop.xlane.xlu0 %702
    %v704 = vrcp.pop %v703
    %v706 = vlaneseq
    %v707 = vshrl.u32 %v706, 7
    %v708 = vsub.s32 0, %v707
    %v709 = vrot.slane %v704, %v708
    %v710 = vlaneseq
    %v711 = vshrl.u32 %v710, 7
    %v712 = vsub.s32 1, %v711
    %v713 = vrot.slane %v704, %v712
    %v714 = vlaneseq
    %v715 = vshrl.u32 %v714, 7
    %v716 = vsub.s32 2, %v715
    %v717 = vrot.slane %v704, %v716
    %v718 = vlaneseq
    %v719 = vshrl.u32 %v718, 7
    %v720 = vsub.s32 3, %v719
    %v721 = vrot.slane %v704, %v720
    %v722 = vlaneseq
    %v723 = vshrl.u32 %v722, 7
    %v724 = vsub.s32 4, %v723
    %v725 = vrot.slane %v704, %v724
    %v726 = vlaneseq
    %v727 = vshrl.u32 %v726, 7
    %v728 = vsub.s32 5, %v727
    %v729 = vrot.slane %v704, %v728
    %v730 = vlaneseq
    %v731 = vshrl.u32 %v730, 7
    %v732 = vsub.s32 6, %v731
    %v733 = vrot.slane %v704, %v732
    %v734 = vlaneseq
    %v735 = vshrl.u32 %v734, 7
    %v736 = vsub.s32 7, %v735
    %v737 = vrot.slane %v704, %v736
    %v746 = vmul.f32 %v526, %v709
    %v747 = vmul.f32 %v528, %v709
    %v748 = vmul.f32 %v530, %v713
    %v749 = vmul.f32 %v532, %v713
    %v750 = vmul.f32 %v534, %v717
    %v751 = vmul.f32 %v536, %v717
    %v752 = vmul.f32 %v538, %v721
    %v753 = vmul.f32 %v540, %v721
    %v754 = vmul.f32 %v542, %v725
    %v755 = vmul.f32 %v544, %v725
    %v756 = vmul.f32 %v546, %v729
    %v757 = vmul.f32 %v548, %v729
    %v758 = vmul.f32 %v550, %v733
    %v759 = vmul.f32 %v552, %v733
    %v760 = vmul.f32 %v554, %v737
    %v761 = vmul.f32 %v556, %v737
    %v763 = vlaneseq
    %v764 = vshrl.u32 %v763, 7
    %v765 = vsub.s32 0, %v764
    %v766 = vrot.slane %v75, %v765
    %768 = vbcast.lane.b32.xlu0 %v766, 256
    %v769 = vpop.permute.xlu0 %768
    %s771 = sor.u32 256, 8
    %772 = vbcast.lane.b32.xlu0 %v766, %s771
    %v773 = vpop.permute.xlu0 %772
    %v776 = vmul.f32 %v746, %v769
    %v777 = vmul.f32 %v747, %v773
    %v778 = vmul.f32 %v748, %v769
    %v779 = vmul.f32 %v749, %v773
    %v780 = vmul.f32 %v750, %v769
    %v781 = vmul.f32 %v751, %v773
    %v782 = vmul.f32 %v752, %v769
    %v783 = vmul.f32 %v753, %v773
    %v784 = vmul.f32 %v754, %v769
    %v785 = vmul.f32 %v755, %v773
    %v786 = vmul.f32 %v756, %v769
    %v787 = vmul.f32 %v757, %v773
    %v788 = vmul.f32 %v758, %v769
    %v789 = vmul.f32 %v759, %v773
    %v790 = vmul.f32 %v760, %v769
    %v791 = vmul.f32 %v761, %v773
    %793 = vset.pattern.permute.xlu0 0
    %794 = vperm.xlu0 %793, %v776
    %v795 = vpop.permute.xlu0 %794
    %798 = vset.pattern.permute.xlu0 0
    %799 = vperm.xlu0 %798, %v777
    %v800 = vpop.permute.xlu0 %799
    %803 = vset.pattern.permute.xlu0 0
    %804 = vperm.xlu0 %803, %v778
    %v805 = vpop.permute.xlu0 %804
    %808 = vset.pattern.permute.xlu0 0
    %809 = vperm.xlu0 %808, %v779
    %v810 = vpop.permute.xlu0 %809
    %813 = vset.pattern.permute.xlu0 0
    %814 = vperm.xlu0 %813, %v780
    %v815 = vpop.permute.xlu0 %814
    %818 = vset.pattern.permute.xlu0 0
    %819 = vperm.xlu0 %818, %v781
    %v820 = vpop.permute.xlu0 %819
    %823 = vset.pattern.permute.xlu0 0
    %824 = vperm.xlu0 %823, %v782
    %v825 = vpop.permute.xlu0 %824
    %828 = vset.pattern.permute.xlu0 0
    %829 = vperm.xlu0 %828, %v783
    %v830 = vpop.permute.xlu0 %829
    %833 = vset.pattern.permute.xlu0 0
    %834 = vperm.xlu0 %833, %v784
    %v835 = vpop.permute.xlu0 %834
    %838 = vset.pattern.permute.xlu0 0
    %839 = vperm.xlu0 %838, %v785
    %v840 = vpop.permute.xlu0 %839
    %843 = vset.pattern.permute.xlu0 0
    %844 = vperm.xlu0 %843, %v786
    %v845 = vpop.permute.xlu0 %844
    %848 = vset.pattern.permute.xlu0 0
    %849 = vperm.xlu0 %848, %v787
    %v850 = vpop.permute.xlu0 %849
    %853 = vset.pattern.permute.xlu0 0
    %854 = vperm.xlu0 %853, %v788
    %v855 = vpop.permute.xlu0 %854
    %858 = vset.pattern.permute.xlu0 0
    %859 = vperm.xlu0 %858, %v789
    %v860 = vpop.permute.xlu0 %859
    %863 = vset.pattern.permute.xlu0 0
    %864 = vperm.xlu0 %863, %v790
    %v865 = vpop.permute.xlu0 %864
    %868 = vset.pattern.permute.xlu0 0
    %869 = vperm.xlu0 %868, %v791
    %v870 = vpop.permute.xlu0 %869
    %v872 = vmul.f32 %v795, %v50
    %v873 = vmul.f32 %v800, %v51
    %v874 = vmul.f32 %v805, %v52
    %v875 = vmul.f32 %v810, %v53
    %v876 = vmul.f32 %v815, %v54
    %v877 = vmul.f32 %v820, %v55
    %v878 = vmul.f32 %v825, %v56
    %v879 = vmul.f32 %v830, %v57
    %v880 = vmul.f32 %v835, %v58
    %v881 = vmul.f32 %v840, %v59
    %v882 = vmul.f32 %v845, %v60
    %v883 = vmul.f32 %v850, %v61
    %v884 = vmul.f32 %v855, %v62
    %v885 = vmul.f32 %v860, %v63
    %v886 = vmul.f32 %v865, %v64
    %v887 = vmul.f32 %v870, %v65
    %v888 = vsel %vm77, %v872, 0.0
    %v889 = vsel %vm77, %v873, 0.0
    %v890 = vadd.f32 %v888, %v889
    %v891 = vrot.slane %v890, 4
    %v892 = vadd.f32 %v890, %v891
    %v893 = vrot.slane %v892, 2
    %v894 = vadd.f32 %v892, %v893
    %v895 = vrot.slane %v894, 1
    %v896 = vadd.f32 %v894, %v895
    %v897 = vsel %vm77, %v874, 0.0
    %v898 = vsel %vm77, %v875, 0.0
    %v899 = vadd.f32 %v897, %v898
    %v900 = vrot.slane %v899, 4
    %v901 = vadd.f32 %v899, %v900
    %v902 = vrot.slane %v901, 2
    %v903 = vadd.f32 %v901, %v902
    %v904 = vrot.slane %v903, 1
    %v905 = vadd.f32 %v903, %v904
    %v906 = vsel %vm77, %v876, 0.0
    %v907 = vsel %vm77, %v877, 0.0
    %v908 = vadd.f32 %v906, %v907
    %v909 = vrot.slane %v908, 4
    %v910 = vadd.f32 %v908, %v909
    %v911 = vrot.slane %v910, 2
    %v912 = vadd.f32 %v910, %v911
    %v913 = vrot.slane %v912, 1
    %v914 = vadd.f32 %v912, %v913
    %v915 = vsel %vm77, %v878, 0.0
    %v916 = vsel %vm77, %v879, 0.0
    %v917 = vadd.f32 %v915, %v916
    %v918 = vrot.slane %v917, 4
    %v919 = vadd.f32 %v917, %v918
    %v920 = vrot.slane %v919, 2
    %v921 = vadd.f32 %v919, %v920
    %v922 = vrot.slane %v921, 1
    %v923 = vadd.f32 %v921, %v922
    %v924 = vsel %vm77, %v880, 0.0
    %v925 = vsel %vm77, %v881, 0.0
    %v926 = vadd.f32 %v924, %v925
    %v927 = vrot.slane %v926, 4
    %v928 = vadd.f32 %v926, %v927
    %v929 = vrot.slane %v928, 2
    %v930 = vadd.f32 %v928, %v929
    %v931 = vrot.slane %v930, 1
    %v932 = vadd.f32 %v930, %v931
    %v933 = vsel %vm77, %v882, 0.0
    %v934 = vsel %vm77, %v883, 0.0
    %v935 = vadd.f32 %v933, %v934
    %v936 = vrot.slane %v935, 4
    %v937 = vadd.f32 %v935, %v936
    %v938 = vrot.slane %v937, 2
    %v939 = vadd.f32 %v937, %v938
    %v940 = vrot.slane %v939, 1
    %v941 = vadd.f32 %v939, %v940
    %v942 = vsel %vm77, %v884, 0.0
    %v943 = vsel %vm77, %v885, 0.0
    %v944 = vadd.f32 %v942, %v943
    %v945 = vrot.slane %v944, 4
    %v946 = vadd.f32 %v944, %v945
    %v947 = vrot.slane %v946, 2
    %v948 = vadd.f32 %v946, %v947
    %v949 = vrot.slane %v948, 1
    %v950 = vadd.f32 %v948, %v949
    %v951 = vsel %vm77, %v886, 0.0
    %v952 = vsel %vm77, %v887, 0.0
    %v953 = vadd.f32 %v951, %v952
    %v954 = vrot.slane %v953, 4
    %v955 = vadd.f32 %v953, %v954
    %v956 = vrot.slane %v955, 2
    %v957 = vadd.f32 %v955, %v956
    %v958 = vrot.slane %v957, 1
    %v959 = vadd.f32 %v957, %v958
    %v960 = vstv %s76
    %v961 = vadd.f32 %v896, %v960
    %v962 = vadd.f32 %v905, %v960
    %v963 = vadd.f32 %v914, %v960
    %v964 = vadd.f32 %v923, %v960
    %v965 = vadd.f32 %v932, %v960
    %v966 = vadd.f32 %v941, %v960
    %v967 = vadd.f32 %v950, %v960
    %v968 = vadd.f32 %v959, %v960
    %v977 = vsel %vm449, %v962, %v961
    %v978 = vsel %vm451, %v963, %v977
    %v979 = vsel %vm453, %v964, %v978
    %v980 = vsel %vm455, %v965, %v979
    %v981 = vsel %vm457, %v966, %v980
    %v982 = vsel %vm459, %v967, %v981
    %v983 = vsel %vm461, %v968, %v982
    %985 = vst.msk [vmem:[#allocation8] sm:$0xff] %vm77, %v983
    // Predicated region
    $region30: #{tpu_custom_call.1} parent=1 // pred_check
      _
    $region31: #{tpu_custom_call.1} parent=1 // pred_check_branch
      %987 = sbr.rel (0) target = $region33
    $region32: #{tpu_custom_call.1} parent=1 // pred_region
      %s989 = ssub.s32 128, 128
      %990 = vsyncadd [#allocation5], %s989
      %s992 = sshll.u32 [#allocation8], 4
      %s993 = int_to_ptr.vmem [resolvable:$true] %s992
      %995 = dma.vmem_to_hbm [thread:$0]  %s993, 128, %s5, [#allocation5]
    $region33: #{tpu_custom_call.1} parent=1 // pred_fallthru
      _
    // Predicated region
    $region34: #{tpu_custom_call.1} parent=1 // pred_check
      _
    $region35: #{tpu_custom_call.1} parent=1 // pred_check_branch
      %997 = sbr.rel (0) target = $region37
    $region36: #{tpu_custom_call.1} parent=1 // pred_region
      %998 = dma.done [#allocation5], 128
    $region37: #{tpu_custom_call.1} parent=1 // pred_fallthru
      _
    %999 = vsyncpa [#allocation4], 1
    %1000 = vsyncpa [#allocation7], 1
    %1001 = vsyncpa [#allocation5], 1

</llo_original>
